<compile_context>
chip_gen: v6e
topology: v6e:2x2x1
jax: 0.10.0
libtpu: 0.0.40
codegen_flags: <defaults>
</compile_context>

<pallas_src>
import functools

import jax
import jax.numpy as jnp
from jax.experimental import pallas as pl
from jax.experimental.pallas import tpu as pltpu


def _round_up(x, m):
    return ((x + m - 1) // m) * m


def _vae_clinical_kernel(
    dims,
    # gridded inputs
    x_ref, eps_ref,
    # resident weights / biases
    we1_ref, be1_ref,
    we2m_ref, be2m_ref, we2v_ref, be2v_ref,
    wd1_ref, bd1_ref, wd2_ref, bd2_ref,
    wc1_ref, bc1_ref, wc2_ref, bc2_ref, wc3_ref, bc3_ref,
    # packed lane-dense output slab
    out_ref,
):
    input_dim, features, num_classes, packed_width = dims

    x = x_ref[...]
    eps = eps_ref[...]

    # ---- encoder ----
    h = jnp.maximum(
        jnp.dot(x, we1_ref[...], preferred_element_type=jnp.float32) + be1_ref[...],
        0.0,
    )
    # split head: two lane-contiguous matmuls (no sub-lane-tile slice)
    mu = jnp.dot(h, we2m_ref[...], preferred_element_type=jnp.float32) + be2m_ref[...]
    log_var = (
        jnp.dot(h, we2v_ref[...], preferred_element_type=jnp.float32) + be2v_ref[...]
    )

    # ---- reparametrize (training semantics, deterministic eps from host) ----
    z = mu + eps * jnp.exp(0.5 * log_var)

    # ---- decoder (output_layer = ReLU) ----
    hd = jnp.maximum(
        jnp.dot(z, wd1_ref[...], preferred_element_type=jnp.float32) + bd1_ref[...],
        0.0,
    )
    recon = jnp.maximum(
        jnp.dot(hd, wd2_ref[...], preferred_element_type=jnp.float32) + bd2_ref[...],
        0.0,
    )

    # ---- classifier_latent ----
    c1 = jnp.maximum(
        jnp.dot(z, wc1_ref[...], preferred_element_type=jnp.float32) + bc1_ref[...],
        0.0,
    )
    c2 = jnp.maximum(
        jnp.dot(c1, wc2_ref[...], preferred_element_type=jnp.float32) + bc2_ref[...],
        0.0,
    )
    logits = (
        jnp.dot(c2, wc3_ref[...], preferred_element_type=jnp.float32) + bc3_ref[...]
    )
    # numerically stable softmax(dim=1), reciprocal on the EUP slot
    m = jnp.max(logits, axis=1, keepdims=True)
    e = jnp.exp(logits - m)
    denom = jnp.sum(e, axis=1, keepdims=True)
    probs = e * pl.reciprocal(denom, approx=True)
    # torch.where(isnan, 0, probs)
    probs = jnp.where(jnp.isnan(probs), jnp.zeros_like(probs), probs)

    # ---- single lane-dense store of the packed output slab ----
    pieces = [recon, mu, log_var, z, probs]
    used = input_dim + 3 * features + num_classes
    pad = packed_width - used
    if pad:
        pieces.append(jnp.zeros((x.shape[0], pad), jnp.float32))
    out_ref[...] = jnp.concatenate(pieces, axis=1)


def vae_clinical_forward(x, eps, params, *, features, block_batch=128):
    """Run the fused VAE_clinical forward.

    x:   (B, input_dim) f32
    eps: (B, features)  f32   (reparameterization noise, training semantics)
    Returns (reconstruction, mu, log_var, z, class_probs).
    """
    B, input_dim = x.shape
    mid_dim = params["we1"].shape[1]
    num_classes = params["wc3"].shape[1]

    # ---- batch tile: multiple of 8 sublanes; pad B to a whole number of tiles ----
    tb = min(block_batch, _round_up(B, 8))
    tb = max(8, (tb // 8) * 8)
    b_pad = _round_up(B, tb)
    if b_pad != B:
        x = jnp.pad(x, ((0, b_pad - B), (0, 0)))
        eps = jnp.pad(eps, ((0, b_pad - B), (0, 0)))
    grid = (b_pad // tb,)

    # ---- packed, lane-dense output slab ----
    used = input_dim + 3 * features + num_classes
    packed = _round_up(used, 128)

    weight_inputs = (
        params["we1"], params["be1"],
        params["we2_mu"], params["be2_mu"], params["we2_logvar"], params["be2_logvar"],
        params["wd1"], params["bd1"], params["wd2"], params["bd2"],
        params["wc1"], params["bc1"], params["wc2"], params["bc2"],
        params["wc3"], params["bc3"],
    )

    def resident_spec(a):
        # full-array block, constant index_map -> fetched once, stays in VMEM
        return pl.BlockSpec(a.shape, lambda i: (0, 0))

    in_specs = [
        pl.BlockSpec((tb, input_dim), lambda i: (i, 0)),   # x tile
        pl.BlockSpec((tb, features), lambda i: (i, 0)),    # eps tile
    ] + [resident_spec(w) for w in weight_inputs]

    out_spec = pl.BlockSpec((tb, packed), lambda i: (i, 0))
    out_shape = jax.ShapeDtypeStruct((b_pad, packed), jnp.float32)

    # ---- advisory cost estimate for the XLA scheduler ----
    f2, f4 = features // 2, features // 4
    flops = 2 * b_pad * (
        input_dim * mid_dim + mid_dim * 2 * features      # encoder
        + features * mid_dim + mid_dim * input_dim        # decoder
        + features * f2 + f2 * f4 + f4 * num_classes      # classifier_latent
    )
    transcendentals = b_pad * (features + num_classes + 1)
    bytes_accessed = 4 * (
        x.size + eps.size + sum(int(w.size) for w in weight_inputs) + b_pad * packed
    )
    cost = pl.CostEstimate(
        flops=flops, transcendentals=transcendentals, bytes_accessed=bytes_accessed
    )

    packed_out = pl.pallas_call(
        functools.partial(
            _vae_clinical_kernel, (input_dim, features, num_classes, packed)
        ),
        out_shape=out_shape,
        grid=grid,
        in_specs=in_specs,
        out_specs=out_spec,
        compiler_params=pltpu.CompilerParams(dimension_semantics=("parallel",)),
        cost_estimate=cost,
    )(x, eps, *weight_inputs)

    # ---- unpack outside the kernel (cheap XLA slices) ----
    o0 = input_dim
    recon = packed_out[:B, :o0]
    mu = packed_out[:B, o0:o0 + features]
    log_var = packed_out[:B, o0 + features:o0 + 2 * features]
    z = packed_out[:B, o0 + 2 * features:o0 + 3 * features]
    probs = packed_out[:B, o0 + 3 * features:o0 + 3 * features + num_classes]
    return recon, mu, log_var, z, probs


def init_params(key, input_dim, mid_dim, features, num_classes):
    """Deterministic parameter init (uniform, PyTorch-Linear-style bounds).

    Weights stored as (in_features, out_features) so the kernel does x @ W + b.
    Biases stored as (1, out_features) for clean lane broadcasting.
    The encoder head (one Linear with 2*features outputs in PyTorch) is split
    column-wise into a mu head and a log_var head — identical math, no
    lane-misaligned slice inside the kernel.
    """
    def linear(k, fan_in, fan_out):
        kw, kb = jax.random.split(k)
        bound = 1.0 / jnp.sqrt(fan_in)
        w = jax.random.uniform(kw, (fan_in, fan_out), jnp.float32, -bound, bound)
        b = jax.random.uniform(kb, (1, fan_out), jnp.float32, -bound, bound)
        return w, b

    keys = jax.random.split(key, 8)
    p = {}
    # encoder
    p["we1"], p["be1"] = linear(keys[0], input_dim, mid_dim)
    we2, be2 = linear(keys[1], mid_dim, 2 * features)
    # .view(-1, 2, features): cols [0:F] -> mu, cols [F:2F] -> log_var
    p["we2_mu"], p["we2_logvar"] = we2[:, :features], we2[:, features:]
    p["be2_mu"], p["be2_logvar"] = be2[:, :features], be2[:, features:]
    # decoder
    p["wd1"], p["bd1"] = linear(keys[2], features, mid_dim)
    p["wd2"], p["bd2"] = linear(keys[3], mid_dim, input_dim)
    # classifier_latent
    p["wc1"], p["bc1"] = linear(keys[4], features, features // 2)
    p["wc2"], p["bc2"] = linear(keys[5], features // 2, features // 4)
    p["wc3"], p["bc3"] = linear(keys[6], features // 4, num_classes)
    # NOTE: self.classifier (on input_dim) is defined in __init__ but never used
    # in forward(), so it is intentionally not materialized here.
    return p


if __name__ == "__main__":
    # Small shapes consistent with the module; B > TB so the batch grid is
    # actually exercised (2 tiles of 128 rows).
    B, input_dim, mid_dim, features, num_classes = 256, 64, 32, 16, 4

    key = jax.random.PRNGKey(0)
    k_params, k_x, k_eps, k_clin = jax.random.split(key, 4)

    params = init_params(k_params, input_dim, mid_dim, features, num_classes)
    x = jax.random.normal(k_x, (B, input_dim), jnp.float32)
    # clinical_x only gates the branch in forward(); pass a dummy (non-None).
    clinical_x = jax.random.normal(k_clin, (B, 3), jnp.float32)
    # deterministic eps for the reparameterization trick (training-mode semantics)
    eps = jax.random.normal(k_eps, (B, features), jnp.float32)

    recon, mu, log_var, z, class_probs = vae_clinical_forward(
        x, eps, params, features=features
    )
    jax.block_until_ready((recon, mu, log_var, z, class_probs))

    # Pure-JAX reference check of the same math.
    h = jnp.maximum(x @ params["we1"] + params["be1"], 0.0)
    mu_r = h @ params["we2_mu"] + params["be2_mu"]
    lv_r = h @ params["we2_logvar"] + params["be2_logvar"]
    z_r = mu_r + eps * jnp.exp(0.5 * lv_r)
    rec_r = jnp.maximum(
        jnp.maximum(z_r @ params["wd1"] + params["bd1"], 0.0) @ params["wd2"]
        + params["bd2"],
        0.0,
    )
    c = jnp.maximum(z_r @ params["wc1"] + params["bc1"], 0.0)
    c = jnp.maximum(c @ params["wc2"] + params["bc2"], 0.0)
    probs_r = jax.nn.softmax(c @ params["wc3"] + params["bc3"], axis=1)

    assert jnp.allclose(recon, rec_r, atol=1e-4), "recon mismatch"
    assert jnp.allclose(mu, mu_r, atol=1e-4), "mu mismatch"
    assert jnp.allclose(log_var, lv_r, atol=1e-4), "log_var mismatch"
    assert jnp.allclose(z, z_r, atol=1e-4), "z mismatch"
    # probs uses pl.reciprocal(approx=True) on the EUP -> slightly looser tol
    assert jnp.allclose(class_probs, probs_r, atol=1e-3), "probs mismatch"
    assert not bool(jnp.isnan(recon).any()), "NaN value found in output"

    print("KERNEL_OK")
</pallas_src>

<mosaic_0001>
module attributes {stable_mosaic.version = 11 : i64} {
  func.func @_vae_clinical_kernel(%arg0: i32, %arg1: memref<128x64xf32, #tpu.memory_space<vmem>>, %arg2: memref<128x16xf32, #tpu.memory_space<vmem>>, %arg3: memref<64x32xf32, #tpu.memory_space<vmem>>, %arg4: memref<1x32xf32, #tpu.memory_space<vmem>>, %arg5: memref<32x16xf32, #tpu.memory_space<vmem>>, %arg6: memref<1x16xf32, #tpu.memory_space<vmem>>, %arg7: memref<32x16xf32, #tpu.memory_space<vmem>>, %arg8: memref<1x16xf32, #tpu.memory_space<vmem>>, %arg9: memref<16x32xf32, #tpu.memory_space<vmem>>, %arg10: memref<1x32xf32, #tpu.memory_space<vmem>>, %arg11: memref<32x64xf32, #tpu.memory_space<vmem>>, %arg12: memref<1x64xf32, #tpu.memory_space<vmem>>, %arg13: memref<16x8xf32, #tpu.memory_space<vmem>>, %arg14: memref<1x8xf32, #tpu.memory_space<vmem>>, %arg15: memref<8x4xf32, #tpu.memory_space<vmem>>, %arg16: memref<1x4xf32, #tpu.memory_space<vmem>>, %arg17: memref<4x4xf32, #tpu.memory_space<vmem>>, %arg18: memref<1x4xf32, #tpu.memory_space<vmem>>, %arg19: memref<128x128xf32, #tpu.memory_space<vmem>>) attributes {dimension_semantics = [#tpu.dimension_semantics<parallel>], iteration_bounds = array<i64: 2>, scalar_prefetch = 0 : i64, scratch_operands = 0 : i64, tpu.core_type = #tpu.core_type<tc>, window_params = [{transform_indices = @transform_0, window_bounds = array<i64: 128, 64>}, {transform_indices = @transform_1, window_bounds = array<i64: 128, 16>}, {pipeline_mode = #tpu.pipeline_mode<synchronous>, transform_indices = @transform_2, window_bounds = array<i64: 64, 32>}, {pipeline_mode = #tpu.pipeline_mode<synchronous>, transform_indices = @transform_3, window_bounds = array<i64: 1, 32>}, {pipeline_mode = #tpu.pipeline_mode<synchronous>, transform_indices = @transform_4, window_bounds = array<i64: 32, 16>}, {pipeline_mode = #tpu.pipeline_mode<synchronous>, transform_indices = @transform_5, window_bounds = array<i64: 1, 16>}, {pipeline_mode = #tpu.pipeline_mode<synchronous>, transform_indices = @transform_6, window_bounds = array<i64: 32, 16>}, {pipeline_mode = #tpu.pipeline_mode<synchronous>, transform_indices = @transform_7, window_bounds = array<i64: 1, 16>}, {pipeline_mode = #tpu.pipeline_mode<synchronous>, transform_indices = @transform_8, window_bounds = array<i64: 16, 32>}, {pipeline_mode = #tpu.pipeline_mode<synchronous>, transform_indices = @transform_9, window_bounds = array<i64: 1, 32>}, {pipeline_mode = #tpu.pipeline_mode<synchronous>, transform_indices = @transform_10, window_bounds = array<i64: 32, 64>}, {pipeline_mode = #tpu.pipeline_mode<synchronous>, transform_indices = @transform_11, window_bounds = array<i64: 1, 64>}, {pipeline_mode = #tpu.pipeline_mode<synchronous>, transform_indices = @transform_12, window_bounds = array<i64: 16, 8>}, {pipeline_mode = #tpu.pipeline_mode<synchronous>, transform_indices = @transform_13, window_bounds = array<i64: 1, 8>}, {pipeline_mode = #tpu.pipeline_mode<synchronous>, transform_indices = @transform_14, window_bounds = array<i64: 8, 4>}, {pipeline_mode = #tpu.pipeline_mode<synchronous>, transform_indices = @transform_15, window_bounds = array<i64: 1, 4>}, {pipeline_mode = #tpu.pipeline_mode<synchronous>, transform_indices = @transform_16, window_bounds = array<i64: 4, 4>}, {pipeline_mode = #tpu.pipeline_mode<synchronous>, transform_indices = @transform_17, window_bounds = array<i64: 1, 4>}, {transform_indices = @transform_18, window_bounds = array<i64: 128, 128>}]} {
    %c0 = arith.constant 0 : index
    %c0_0 = arith.constant 0 : index
    %0 = vector.load %arg1[%c0, %c0_0] : memref<128x64xf32, #tpu.memory_space<vmem>>, vector<128x64xf32>
    %c0_1 = arith.constant 0 : index
    %c0_2 = arith.constant 0 : index
    %1 = vector.load %arg2[%c0_1, %c0_2] : memref<128x16xf32, #tpu.memory_space<vmem>>, vector<128x16xf32>
    %c0_3 = arith.constant 0 : index
    %c0_4 = arith.constant 0 : index
    %2 = vector.load %arg3[%c0_3, %c0_4] : memref<64x32xf32, #tpu.memory_space<vmem>>, vector<64x32xf32>
    %cst = arith.constant dense<0.000000e+00> : vector<128x32xf32>
    %3 = tpu.matmul %0, %2, %cst {dimension_numbers = #tpu.dot_dimension_numbers<[1], [0], [0], [1], [0, 0, 1, 1], [], []>} : vector<128x64xf32>, vector<64x32xf32>, vector<128x32xf32> -> vector<128x32xf32>
    %c0_5 = arith.constant 0 : index
    %c0_6 = arith.constant 0 : index
    %4 = vector.load %arg4[%c0_5, %c0_6] : memref<1x32xf32, #tpu.memory_space<vmem>>, vector<1x32xf32>
    %5 = vector.broadcast %4 : vector<1x32xf32> to vector<128x32xf32>
    %6 = arith.addf %3, %5 : vector<128x32xf32>
    %cst_7 = arith.constant 0.000000e+00 : f32
    %7 = vector.broadcast %cst_7 : f32 to vector<128x32xf32>
    %8 = arith.maximumf %6, %7 : vector<128x32xf32>
    %c0_8 = arith.constant 0 : index
    %c0_9 = arith.constant 0 : index
    %9 = vector.load %arg5[%c0_8, %c0_9] : memref<32x16xf32, #tpu.memory_space<vmem>>, vector<32x16xf32>
    %cst_10 = arith.constant dense<0.000000e+00> : vector<128x16xf32>
    %10 = tpu.matmul %8, %9, %cst_10 {dimension_numbers = #tpu.dot_dimension_numbers<[1], [0], [0], [1], [0, 0, 1, 1], [], []>} : vector<128x32xf32>, vector<32x16xf32>, vector<128x16xf32> -> vector<128x16xf32>
    %c0_11 = arith.constant 0 : index
    %c0_12 = arith.constant 0 : index
    %11 = vector.load %arg6[%c0_11, %c0_12] : memref<1x16xf32, #tpu.memory_space<vmem>>, vector<1x16xf32>
    %12 = vector.broadcast %11 : vector<1x16xf32> to vector<128x16xf32>
    %13 = arith.addf %10, %12 : vector<128x16xf32>
    %c0_13 = arith.constant 0 : index
    %c0_14 = arith.constant 0 : index
    %14 = vector.load %arg7[%c0_13, %c0_14] : memref<32x16xf32, #tpu.memory_space<vmem>>, vector<32x16xf32>
    %cst_15 = arith.constant dense<0.000000e+00> : vector<128x16xf32>
    %15 = tpu.matmul %8, %14, %cst_15 {dimension_numbers = #tpu.dot_dimension_numbers<[1], [0], [0], [1], [0, 0, 1, 1], [], []>} : vector<128x32xf32>, vector<32x16xf32>, vector<128x16xf32> -> vector<128x16xf32>
    %c0_16 = arith.constant 0 : index
    %c0_17 = arith.constant 0 : index
    %16 = vector.load %arg8[%c0_16, %c0_17] : memref<1x16xf32, #tpu.memory_space<vmem>>, vector<1x16xf32>
    %17 = vector.broadcast %16 : vector<1x16xf32> to vector<128x16xf32>
    %18 = arith.addf %15, %17 : vector<128x16xf32>
    %cst_18 = arith.constant 5.000000e-01 : f32
    %19 = vector.broadcast %cst_18 : f32 to vector<128x16xf32>
    %20 = arith.mulf %19, %18 : vector<128x16xf32>
    %21 = math.exp %20 : vector<128x16xf32>
    %22 = arith.mulf %1, %21 : vector<128x16xf32>
    %23 = arith.addf %13, %22 : vector<128x16xf32>
    %c0_19 = arith.constant 0 : index
    %c0_20 = arith.constant 0 : index
    %24 = vector.load %arg9[%c0_19, %c0_20] : memref<16x32xf32, #tpu.memory_space<vmem>>, vector<16x32xf32>
    %cst_21 = arith.constant dense<0.000000e+00> : vector<128x32xf32>
    %25 = tpu.matmul %23, %24, %cst_21 {dimension_numbers = #tpu.dot_dimension_numbers<[1], [0], [0], [1], [0, 0, 1, 1], [], []>} : vector<128x16xf32>, vector<16x32xf32>, vector<128x32xf32> -> vector<128x32xf32>
    %c0_22 = arith.constant 0 : index
    %c0_23 = arith.constant 0 : index
    %26 = vector.load %arg10[%c0_22, %c0_23] : memref<1x32xf32, #tpu.memory_space<vmem>>, vector<1x32xf32>
    %27 = vector.broadcast %26 : vector<1x32xf32> to vector<128x32xf32>
    %28 = arith.addf %25, %27 : vector<128x32xf32>
    %cst_24 = arith.constant 0.000000e+00 : f32
    %29 = vector.broadcast %cst_24 : f32 to vector<128x32xf32>
    %30 = arith.maximumf %28, %29 : vector<128x32xf32>
    %c0_25 = arith.constant 0 : index
    %c0_26 = arith.constant 0 : index
    %31 = vector.load %arg11[%c0_25, %c0_26] : memref<32x64xf32, #tpu.memory_space<vmem>>, vector<32x64xf32>
    %cst_27 = arith.constant dense<0.000000e+00> : vector<128x64xf32>
    %32 = tpu.matmul %30, %31, %cst_27 {dimension_numbers = #tpu.dot_dimension_numbers<[1], [0], [0], [1], [0, 0, 1, 1], [], []>} : vector<128x32xf32>, vector<32x64xf32>, vector<128x64xf32> -> vector<128x64xf32>
    %c0_28 = arith.constant 0 : index
    %c0_29 = arith.constant 0 : index
    %33 = vector.load %arg12[%c0_28, %c0_29] : memref<1x64xf32, #tpu.memory_space<vmem>>, vector<1x64xf32>
    %34 = vector.broadcast %33 : vector<1x64xf32> to vector<128x64xf32>
    %35 = arith.addf %32, %34 : vector<128x64xf32>
    %cst_30 = arith.constant 0.000000e+00 : f32
    %36 = vector.broadcast %cst_30 : f32 to vector<128x64xf32>
    %37 = arith.maximumf %35, %36 : vector<128x64xf32>
    %c0_31 = arith.constant 0 : index
    %c0_32 = arith.constant 0 : index
    %38 = vector.load %arg13[%c0_31, %c0_32] : memref<16x8xf32, #tpu.memory_space<vmem>>, vector<16x8xf32>
    %cst_33 = arith.constant dense<0.000000e+00> : vector<128x8xf32>
    %39 = tpu.matmul %23, %38, %cst_33 {dimension_numbers = #tpu.dot_dimension_numbers<[1], [0], [0], [1], [0, 0, 1, 1], [], []>} : vector<128x16xf32>, vector<16x8xf32>, vector<128x8xf32> -> vector<128x8xf32>
    %c0_34 = arith.constant 0 : index
    %c0_35 = arith.constant 0 : index
    %40 = vector.load %arg14[%c0_34, %c0_35] : memref<1x8xf32, #tpu.memory_space<vmem>>, vector<1x8xf32>
    %41 = vector.broadcast %40 : vector<1x8xf32> to vector<128x8xf32>
    %42 = arith.addf %39, %41 : vector<128x8xf32>
    %cst_36 = arith.constant 0.000000e+00 : f32
    %43 = vector.broadcast %cst_36 : f32 to vector<128x8xf32>
    %44 = arith.maximumf %42, %43 : vector<128x8xf32>
    %c0_37 = arith.constant 0 : index
    %c0_38 = arith.constant 0 : index
    %45 = vector.load %arg15[%c0_37, %c0_38] : memref<8x4xf32, #tpu.memory_space<vmem>>, vector<8x4xf32>
    %cst_39 = arith.constant dense<0.000000e+00> : vector<128x4xf32>
    %46 = tpu.matmul %44, %45, %cst_39 {dimension_numbers = #tpu.dot_dimension_numbers<[1], [0], [0], [1], [0, 0, 1, 1], [], []>} : vector<128x8xf32>, vector<8x4xf32>, vector<128x4xf32> -> vector<128x4xf32>
    %c0_40 = arith.constant 0 : index
    %c0_41 = arith.constant 0 : index
    %47 = vector.load %arg16[%c0_40, %c0_41] : memref<1x4xf32, #tpu.memory_space<vmem>>, vector<1x4xf32>
    %48 = vector.broadcast %47 : vector<1x4xf32> to vector<128x4xf32>
    %49 = arith.addf %46, %48 : vector<128x4xf32>
    %cst_42 = arith.constant 0.000000e+00 : f32
    %50 = vector.broadcast %cst_42 : f32 to vector<128x4xf32>
    %51 = arith.maximumf %49, %50 : vector<128x4xf32>
    %c0_43 = arith.constant 0 : index
    %c0_44 = arith.constant 0 : index
    %52 = vector.load %arg17[%c0_43, %c0_44] : memref<4x4xf32, #tpu.memory_space<vmem>>, vector<4x4xf32>
    %cst_45 = arith.constant dense<0.000000e+00> : vector<128x4xf32>
    %53 = tpu.matmul %51, %52, %cst_45 {dimension_numbers = #tpu.dot_dimension_numbers<[1], [0], [0], [1], [0, 0, 1, 1], [], []>} : vector<128x4xf32>, vector<4x4xf32>, vector<128x4xf32> -> vector<128x4xf32>
    %c0_46 = arith.constant 0 : index
    %c0_47 = arith.constant 0 : index
    %54 = vector.load %arg18[%c0_46, %c0_47] : memref<1x4xf32, #tpu.memory_space<vmem>>, vector<1x4xf32>
    %55 = vector.broadcast %54 : vector<1x4xf32> to vector<128x4xf32>
    %56 = arith.addf %53, %55 : vector<128x4xf32>
    %cst_48 = arith.constant dense<0xFF800000> : vector<128xf32>
    %57 = vector.multi_reduction <maximumf>, %56, %cst_48 [1] : vector<128x4xf32> to vector<128xf32>
    %58 = vector.shape_cast %57 : vector<128xf32> to vector<128x1xf32>
    %59 = vector.broadcast %58 : vector<128x1xf32> to vector<128x4xf32>
    %60 = arith.subf %56, %59 : vector<128x4xf32>
    %61 = math.exp %60 : vector<128x4xf32>
    %cst_49 = arith.constant dense<0.000000e+00> : vector<128xf32>
    %62 = vector.multi_reduction <add>, %61, %cst_49 [1] : vector<128x4xf32> to vector<128xf32>
    %63 = vector.shape_cast %62 : vector<128xf32> to vector<128x1xf32>
    %64 = tpu.reciprocal %63 {approx = true} : vector<128x1xf32> -> vector<128x1xf32>
    %65 = vector.broadcast %64 : vector<128x1xf32> to vector<128x4xf32>
    %66 = arith.mulf %61, %65 : vector<128x4xf32>
    %67 = arith.cmpf one, %66, %66 : vector<128x4xf32>
    %cst_50 = arith.constant 0.000000e+00 : f32
    %68 = vector.broadcast %cst_50 : f32 to vector<128x4xf32>
    %69 = arith.select %67, %68, %66 : vector<128x4xi1>, vector<128x4xf32>
    %cst_51 = arith.constant 0.000000e+00 : f32
    %70 = vector.broadcast %cst_51 : f32 to vector<128x12xf32>
    %71 = tpu.concatenate %37, %13, %18, %23, %69, %70 in 1 : vector<128x64xf32>, vector<128x16xf32>, vector<128x16xf32>, vector<128x16xf32>, vector<128x4xf32>, vector<128x12xf32> -> vector<128x128xf32>
    %c0_52 = arith.constant 0 : index
    %c0_53 = arith.constant 0 : index
    %72 = vector.load %arg19[%c0_52, %c0_53] : memref<128x128xf32, #tpu.memory_space<vmem>>, vector<128x128xf32>
    tpu.vector_store %arg19[%c0_52, %c0_53], %71 {strides = array<i32>} : memref<128x128xf32, #tpu.memory_space<vmem>>, vector<128x128xf32>,
    return
  }
  func.func @transform_0(%arg0: i32) -> (i32, i32) {
    %c0_i32 = arith.constant 0 : i32
    %c0_i32_0 = arith.constant 0 : i32
    return %arg0, %c0_i32 : i32, i32
  }
  func.func @transform_1(%arg0: i32) -> (i32, i32) {
    %c0_i32 = arith.constant 0 : i32
    %c0_i32_0 = arith.constant 0 : i32
    return %arg0, %c0_i32 : i32, i32
  }
  func.func @transform_2(%arg0: i32) -> (i32, i32) {
    %c0_i32 = arith.constant 0 : i32
    %c0_i32_0 = arith.constant 0 : i32
    %c0_i32_1 = arith.constant 0 : i32
    return %c0_i32, %c0_i32_0 : i32, i32
  }
  func.func @transform_3(%arg0: i32) -> (i32, i32) {
    %c0_i32 = arith.constant 0 : i32
    %c0_i32_0 = arith.constant 0 : i32
    %c0_i32_1 = arith.constant 0 : i32
    return %c0_i32, %c0_i32_0 : i32, i32
  }
  func.func @transform_4(%arg0: i32) -> (i32, i32) {
    %c0_i32 = arith.constant 0 : i32
    %c0_i32_0 = arith.constant 0 : i32
    %c0_i32_1 = arith.constant 0 : i32
    return %c0_i32, %c0_i32_0 : i32, i32
  }
  func.func @transform_5(%arg0: i32) -> (i32, i32) {
    %c0_i32 = arith.constant 0 : i32
    %c0_i32_0 = arith.constant 0 : i32
    %c0_i32_1 = arith.constant 0 : i32
    return %c0_i32, %c0_i32_0 : i32, i32
  }
  func.func @transform_6(%arg0: i32) -> (i32, i32) {
    %c0_i32 = arith.constant 0 : i32
    %c0_i32_0 = arith.constant 0 : i32
    %c0_i32_1 = arith.constant 0 : i32
    return %c0_i32, %c0_i32_0 : i32, i32
  }
  func.func @transform_7(%arg0: i32) -> (i32, i32) {
    %c0_i32 = arith.constant 0 : i32
    %c0_i32_0 = arith.constant 0 : i32
    %c0_i32_1 = arith.constant 0 : i32
    return %c0_i32, %c0_i32_0 : i32, i32
  }
  func.func @transform_8(%arg0: i32) -> (i32, i32) {
    %c0_i32 = arith.constant 0 : i32
    %c0_i32_0 = arith.constant 0 : i32
    %c0_i32_1 = arith.constant 0 : i32
    return %c0_i32, %c0_i32_0 : i32, i32
  }
  func.func @transform_9(%arg0: i32) -> (i32, i32) {
    %c0_i32 = arith.constant 0 : i32
    %c0_i32_0 = arith.constant 0 : i32
    %c0_i32_1 = arith.constant 0 : i32
    return %c0_i32, %c0_i32_0 : i32, i32
  }
  func.func @transform_10(%arg0: i32) -> (i32, i32) {
    %c0_i32 = arith.constant 0 : i32
    %c0_i32_0 = arith.constant 0 : i32
    %c0_i32_1 = arith.constant 0 : i32
    return %c0_i32, %c0_i32_0 : i32, i32
  }
  func.func @transform_11(%arg0: i32) -> (i32, i32) {
    %c0_i32 = arith.constant 0 : i32
    %c0_i32_0 = arith.constant 0 : i32
    %c0_i32_1 = arith.constant 0 : i32
    return %c0_i32, %c0_i32_0 : i32, i32
  }
  func.func @transform_12(%arg0: i32) -> (i32, i32) {
    %c0_i32 = arith.constant 0 : i32
    %c0_i32_0 = arith.constant 0 : i32
    %c0_i32_1 = arith.constant 0 : i32
    return %c0_i32, %c0_i32_0 : i32, i32
  }
  func.func @transform_13(%arg0: i32) -> (i32, i32) {
    %c0_i32 = arith.constant 0 : i32
    %c0_i32_0 = arith.constant 0 : i32
    %c0_i32_1 = arith.constant 0 : i32
    return %c0_i32, %c0_i32_0 : i32, i32
  }
  func.func @transform_14(%arg0: i32) -> (i32, i32) {
    %c0_i32 = arith.constant 0 : i32
    %c0_i32_0 = arith.constant 0 : i32
    %c0_i32_1 = arith.constant 0 : i32
    return %c0_i32, %c0_i32_0 : i32, i32
  }
  func.func @transform_15(%arg0: i32) -> (i32, i32) {
    %c0_i32 = arith.constant 0 : i32
    %c0_i32_0 = arith.constant 0 : i32
    %c0_i32_1 = arith.constant 0 : i32
    return %c0_i32, %c0_i32_0 : i32, i32
  }
  func.func @transform_16(%arg0: i32) -> (i32, i32) {
    %c0_i32 = arith.constant 0 : i32
    %c0_i32_0 = arith.constant 0 : i32
    %c0_i32_1 = arith.constant 0 : i32
    return %c0_i32, %c0_i32_0 : i32, i32
  }
  func.func @transform_17(%arg0: i32) -> (i32, i32) {
    %c0_i32 = arith.constant 0 : i32
    %c0_i32_0 = arith.constant 0 : i32
    %c0_i32_1 = arith.constant 0 : i32
    return %c0_i32, %c0_i32_0 : i32, i32
  }
  func.func @transform_18(%arg0: i32) -> (i32, i32) {
    %c0_i32 = arith.constant 0 : i32
    %c0_i32_0 = arith.constant 0 : i32
    return %arg0, %c0_i32 : i32, i32
  }
}

</mosaic_0001>

<llo_original>
// kernel: tpu_custom_call.1
$region0: #{tpu_custom_call.1}
  #allocation0 [shape = 'u32[]', space=smem, size = 0x4, offset = 0x4, fixed_abs, tag = 'smem constant byte address 0x4 - core index']
  #allocation1 [shape = 'u32[144,128]{1,0:T(1,128)}', space=vmem, size = 0x12000, scoped, tag = 'internal scratch']
  %s0 = inlined_call_operand.vmem [shape: f32[256,64], index: 0, kind: input, shape index: {}]
  %s1 = inlined_call_operand.vmem [shape: f32[256,16], index: 1, kind: input, shape index: {}]
  %s2 = inlined_call_operand.vmem [shape: f32[64,32], index: 2, kind: input, shape index: {}]
  %s3 = inlined_call_operand.vmem [shape: f32[1,32], index: 3, kind: input, shape index: {}]
  %s4 = inlined_call_operand.vmem [shape: f32[32,16], index: 4, kind: input, shape index: {}]
  %s5 = inlined_call_operand.vmem [shape: f32[1,16], index: 5, kind: input, shape index: {}]
  %s6 = inlined_call_operand.vmem [shape: f32[32,16], index: 6, kind: input, shape index: {}]
  %s7 = inlined_call_operand.vmem [shape: f32[1,16], index: 7, kind: input, shape index: {}]
  %s8 = inlined_call_operand.vmem [shape: f32[16,32], index: 8, kind: input, shape index: {}]
  %s9 = inlined_call_operand.vmem [shape: f32[1,32], index: 9, kind: input, shape index: {}]
  %s10 = inlined_call_operand.vmem [shape: f32[32,64], index: 10, kind: input, shape index: {}]
  %s11 = inlined_call_operand.vmem [shape: f32[1,64], index: 11, kind: input, shape index: {}]
  %s12 = inlined_call_operand.vmem [shape: f32[16,8], index: 12, kind: input, shape index: {}]
  %s13 = inlined_call_operand.vmem [shape: f32[1,8], index: 13, kind: input, shape index: {}]
  %s14 = inlined_call_operand.vmem [shape: f32[8,4], index: 14, kind: input, shape index: {}]
  %s15 = inlined_call_operand.vmem [shape: f32[1,4], index: 15, kind: input, shape index: {}]
  %s16 = inlined_call_operand.vmem [shape: f32[4,4], index: 16, kind: input, shape index: {}]
  %s17 = inlined_call_operand.vmem [shape: f32[1,4], index: 17, kind: input, shape index: {}]
  %s18 = inlined_call_operand.hbm [shape: f32[256,128], index: 18, kind: output, shape index: {}]
  %s19 = sld [smem:[#allocation0]]
  $region105: #{tpu_custom_call.1} parent=0
    _
  %s21 = ssub.s32 1, %s19
  %s22 = scalar_select 0, %s21, %s19
  $region1: #{tpu_custom_call.1} parent=0
    #allocation2 [shape = 'u8[131072]{0}', space=vmem, size = 0x20000, scoped, tag = 'output window, operand 0']
    #allocation3 [shape = 's32[2]{0}', space=sflag, size = 0x8, scoped, tag = 'scoped memory for tpu_custom_call.1']
    %23 = vsyncpa [#allocation3], 0
    %s24 = scalar_lea.sflag [#allocation3], 1
    %25 = vsyncpa %s24, 0
    loop: start=0, step=1, limit=4
    $region2: #{tpu_custom_call.1} parent=1 // loop_pre_header
      _
    $region3: #{tpu_custom_call.1} parent=1 // loop_header
      %s27 = sphi 0, %s31
      %p28 = scmp.ge.s32.totalorder %s27, 4
      %s37 = sphi 0, %s39
      %s40 = sphi 0, %s37
      %s41 = sphi 0, %s40
      %s57 = sphi 0, %s41
      %s63 = sphi 0, %s65
      %s66 = sphi 0, %s63
      %s67 = sphi 0, %s66
      %s83 = sphi 0, %s67
      %s87 = sphi 0, %s87
      %s89 = sphi 0, %s87
      %s90 = sphi 0, %s89
      %s104 = sphi 0, %s90
      %s108 = sphi 0, %s108
      %s110 = sphi 0, %s108
      %s111 = sphi 0, %s110
      %s125 = sphi 0, %s111
      %s129 = sphi 0, %s129
      %s131 = sphi 0, %s129
      %s132 = sphi 0, %s131
      %s146 = sphi 0, %s132
      %s150 = sphi 0, %s150
      %s152 = sphi 0, %s150
      %s153 = sphi 0, %s152
      %s167 = sphi 0, %s153
      %s171 = sphi 0, %s171
      %s173 = sphi 0, %s171
      %s174 = sphi 0, %s173
      %s188 = sphi 0, %s174
      %s192 = sphi 0, %s192
      %s194 = sphi 0, %s192
      %s195 = sphi 0, %s194
      %s209 = sphi 0, %s195
      %s213 = sphi 0, %s213
      %s215 = sphi 0, %s213
      %s216 = sphi 0, %s215
      %s230 = sphi 0, %s216
      %s234 = sphi 0, %s234
      %s236 = sphi 0, %s234
      %s237 = sphi 0, %s236
      %s251 = sphi 0, %s237
      %s255 = sphi 0, %s255
      %s257 = sphi 0, %s255
      %s258 = sphi 0, %s257
      %s272 = sphi 0, %s258
      %s276 = sphi 0, %s276
      %s278 = sphi 0, %s276
      %s279 = sphi 0, %s278
      %s293 = sphi 0, %s279
      %s297 = sphi 0, %s297
      %s299 = sphi 0, %s297
      %s300 = sphi 0, %s299
      %s314 = sphi 0, %s300
      %s318 = sphi 0, %s318
      %s320 = sphi 0, %s318
      %s321 = sphi 0, %s320
      %s335 = sphi 0, %s321
      %s339 = sphi 0, %s339
      %s341 = sphi 0, %s339
      %s342 = sphi 0, %s341
      %s356 = sphi 0, %s342
      %s360 = sphi 0, %s360
      %s362 = sphi 0, %s360
      %s363 = sphi 0, %s362
      %s377 = sphi 0, %s363
      %s381 = sphi 0, %s381
      %s383 = sphi 0, %s381
      %s384 = sphi 0, %s383
      %s398 = sphi 0, %s384
      %s402 = sphi 0, %s402
      %s404 = sphi 0, %s402
      %s405 = sphi 0, %s404
      %s419 = sphi 0, %s405
      %s425 = sphi 0, %s427
      %s428 = sphi 0, %s425
      %s429 = sphi 0, %s428
      %s445 = sphi 0, %s429
    $region4: #{tpu_custom_call.1} parent=1 // loop_header_branch
      %30 = sbr.rel (%p28) target = $region8
    $region5: #{tpu_custom_call.1} parent=1 // loop_body
      %s32 = ssub.s32 %s27, 1
      %s33 = ssub.s32 %s27, 2
      %s34 = sadd.s32 %s27, 1
      %s35 = ssub.s32 %s27, %s34
      %p36 = scmp.eq.s32.totalorder %s35, 0
      %s38 = sadd.s32 %s37, 1
      %s39 = scalar_select %p36, %s37, %s38
      %p42 = pneg %p36
      %p43 = scmp.eq.s32.totalorder %s27, 1
      %p44 = por %p42, %p43
      %p45 = scmp.ne.s32.totalorder %s37, %s40
      %p46 = scmp.eq.s32.totalorder %s27, 0
      %p47 = por %p45, %p46
      %p48 = scmp.ne.s32.totalorder %s37, %s40
      %p49 = scmp.eq.s32.totalorder %s32, 1
      %p50 = por %p48, %p49
      %p51 = scmp.ne.s32.totalorder %s40, %s41
      %p52 = scmp.eq.s32.totalorder %s32, 0
      %p53 = por %p51, %p52
      %p54 = scmp.ne.s32.totalorder %s40, %s41
      %p55 = scmp.eq.s32.totalorder %s33, 1
      %p56 = por %p54, %p55
      %p58 = scmp.ne.s32.totalorder %s41, %s57
      %p59 = scmp.eq.s32.totalorder %s33, 0
      %p60 = por %p58, %p59
      %s61 = ssub.s32 %s27, %s34
      %p62 = scmp.eq.s32.totalorder %s61, 0
      %s64 = sadd.s32 %s63, 1
      %s65 = scalar_select %p62, %s63, %s64
      %p68 = pneg %p62
      %p69 = scmp.eq.s32.totalorder %s27, 1
      %p70 = por %p68, %p69
      %p71 = scmp.ne.s32.totalorder %s63, %s66
      %p72 = scmp.eq.s32.totalorder %s27, 0
      %p73 = por %p71, %p72
      %p74 = scmp.ne.s32.totalorder %s63, %s66
      %p75 = scmp.eq.s32.totalorder %s32, 1
      %p76 = por %p74, %p75
      %p77 = scmp.ne.s32.totalorder %s66, %s67
      %p78 = scmp.eq.s32.totalorder %s32, 0
      %p79 = por %p77, %p78
      %p80 = scmp.ne.s32.totalorder %s66, %s67
      %p81 = scmp.eq.s32.totalorder %s33, 1
      %p82 = por %p80, %p81
      %p84 = scmp.ne.s32.totalorder %s67, %s83
      %p85 = scmp.eq.s32.totalorder %s33, 0
      %p86 = por %p84, %p85
      %s88 = sadd.s32 %s87, 1
      %p91 = scmp.eq.s32.totalorder %s27, 1
      %p92 = scmp.ne.s32.totalorder %s87, %s89
      %p93 = scmp.eq.s32.totalorder %s27, 0
      %p94 = por %p92, %p93
      %p95 = scmp.ne.s32.totalorder %s87, %s89
      %p96 = scmp.eq.s32.totalorder %s32, 1
      %p97 = por %p95, %p96
      %p98 = scmp.ne.s32.totalorder %s89, %s90
      %p99 = scmp.eq.s32.totalorder %s32, 0
      %p100 = por %p98, %p99
      %p101 = scmp.ne.s32.totalorder %s89, %s90
      %p102 = scmp.eq.s32.totalorder %s33, 1
      %p103 = por %p101, %p102
      %p105 = scmp.ne.s32.totalorder %s90, %s104
      %p106 = scmp.eq.s32.totalorder %s33, 0
      %p107 = por %p105, %p106
      %s109 = sadd.s32 %s108, 1
      %p112 = scmp.eq.s32.totalorder %s27, 1
      %p113 = scmp.ne.s32.totalorder %s108, %s110
      %p114 = scmp.eq.s32.totalorder %s27, 0
      %p115 = por %p113, %p114
      %p116 = scmp.ne.s32.totalorder %s108, %s110
      %p117 = scmp.eq.s32.totalorder %s32, 1
      %p118 = por %p116, %p117
      %p119 = scmp.ne.s32.totalorder %s110, %s111
      %p120 = scmp.eq.s32.totalorder %s32, 0
      %p121 = por %p119, %p120
      %p122 = scmp.ne.s32.totalorder %s110, %s111
      %p123 = scmp.eq.s32.totalorder %s33, 1
      %p124 = por %p122, %p123
      %p126 = scmp.ne.s32.totalorder %s111, %s125
      %p127 = scmp.eq.s32.totalorder %s33, 0
      %p128 = por %p126, %p127
      %s130 = sadd.s32 %s129, 1
      %p133 = scmp.eq.s32.totalorder %s27, 1
      %p134 = scmp.ne.s32.totalorder %s129, %s131
      %p135 = scmp.eq.s32.totalorder %s27, 0
      %p136 = por %p134, %p135
      %p137 = scmp.ne.s32.totalorder %s129, %s131
      %p138 = scmp.eq.s32.totalorder %s32, 1
      %p139 = por %p137, %p138
      %p140 = scmp.ne.s32.totalorder %s131, %s132
      %p141 = scmp.eq.s32.totalorder %s32, 0
      %p142 = por %p140, %p141
      %p143 = scmp.ne.s32.totalorder %s131, %s132
      %p144 = scmp.eq.s32.totalorder %s33, 1
      %p145 = por %p143, %p144
      %p147 = scmp.ne.s32.totalorder %s132, %s146
      %p148 = scmp.eq.s32.totalorder %s33, 0
      %p149 = por %p147, %p148
      %s151 = sadd.s32 %s150, 1
      %p154 = scmp.eq.s32.totalorder %s27, 1
      %p155 = scmp.ne.s32.totalorder %s150, %s152
      %p156 = scmp.eq.s32.totalorder %s27, 0
      %p157 = por %p155, %p156
      %p158 = scmp.ne.s32.totalorder %s150, %s152
      %p159 = scmp.eq.s32.totalorder %s32, 1
      %p160 = por %p158, %p159
      %p161 = scmp.ne.s32.totalorder %s152, %s153
      %p162 = scmp.eq.s32.totalorder %s32, 0
      %p163 = por %p161, %p162
      %p164 = scmp.ne.s32.totalorder %s152, %s153
      %p165 = scmp.eq.s32.totalorder %s33, 1
      %p166 = por %p164, %p165
      %p168 = scmp.ne.s32.totalorder %s153, %s167
      %p169 = scmp.eq.s32.totalorder %s33, 0
      %p170 = por %p168, %p169
      %s172 = sadd.s32 %s171, 1
      %p175 = scmp.eq.s32.totalorder %s27, 1
      %p176 = scmp.ne.s32.totalorder %s171, %s173
      %p177 = scmp.eq.s32.totalorder %s27, 0
      %p178 = por %p176, %p177
      %p179 = scmp.ne.s32.totalorder %s171, %s173
      %p180 = scmp.eq.s32.totalorder %s32, 1
      %p181 = por %p179, %p180
      %p182 = scmp.ne.s32.totalorder %s173, %s174
      %p183 = scmp.eq.s32.totalorder %s32, 0
      %p184 = por %p182, %p183
      %p185 = scmp.ne.s32.totalorder %s173, %s174
      %p186 = scmp.eq.s32.totalorder %s33, 1
      %p187 = por %p185, %p186
      %p189 = scmp.ne.s32.totalorder %s174, %s188
      %p190 = scmp.eq.s32.totalorder %s33, 0
      %p191 = por %p189, %p190
      %s193 = sadd.s32 %s192, 1
      %p196 = scmp.eq.s32.totalorder %s27, 1
      %p197 = scmp.ne.s32.totalorder %s192, %s194
      %p198 = scmp.eq.s32.totalorder %s27, 0
      %p199 = por %p197, %p198
      %p200 = scmp.ne.s32.totalorder %s192, %s194
      %p201 = scmp.eq.s32.totalorder %s32, 1
      %p202 = por %p200, %p201
      %p203 = scmp.ne.s32.totalorder %s194, %s195
      %p204 = scmp.eq.s32.totalorder %s32, 0
      %p205 = por %p203, %p204
      %p206 = scmp.ne.s32.totalorder %s194, %s195
      %p207 = scmp.eq.s32.totalorder %s33, 1
      %p208 = por %p206, %p207
      %p210 = scmp.ne.s32.totalorder %s195, %s209
      %p211 = scmp.eq.s32.totalorder %s33, 0
      %p212 = por %p210, %p211
      %s214 = sadd.s32 %s213, 1
      %p217 = scmp.eq.s32.totalorder %s27, 1
      %p218 = scmp.ne.s32.totalorder %s213, %s215
      %p219 = scmp.eq.s32.totalorder %s27, 0
      %p220 = por %p218, %p219
      %p221 = scmp.ne.s32.totalorder %s213, %s215
      %p222 = scmp.eq.s32.totalorder %s32, 1
      %p223 = por %p221, %p222
      %p224 = scmp.ne.s32.totalorder %s215, %s216
      %p225 = scmp.eq.s32.totalorder %s32, 0
      %p226 = por %p224, %p225
      %p227 = scmp.ne.s32.totalorder %s215, %s216
      %p228 = scmp.eq.s32.totalorder %s33, 1
      %p229 = por %p227, %p228
      %p231 = scmp.ne.s32.totalorder %s216, %s230
      %p232 = scmp.eq.s32.totalorder %s33, 0
      %p233 = por %p231, %p232
      %s235 = sadd.s32 %s234, 1
      %p238 = scmp.eq.s32.totalorder %s27, 1
      %p239 = scmp.ne.s32.totalorder %s234, %s236
      %p240 = scmp.eq.s32.totalorder %s27, 0
      %p241 = por %p239, %p240
      %p242 = scmp.ne.s32.totalorder %s234, %s236
      %p243 = scmp.eq.s32.totalorder %s32, 1
      %p244 = por %p242, %p243
      %p245 = scmp.ne.s32.totalorder %s236, %s237
      %p246 = scmp.eq.s32.totalorder %s32, 0
      %p247 = por %p245, %p246
      %p248 = scmp.ne.s32.totalorder %s236, %s237
      %p249 = scmp.eq.s32.totalorder %s33, 1
      %p250 = por %p248, %p249
      %p252 = scmp.ne.s32.totalorder %s237, %s251
      %p253 = scmp.eq.s32.totalorder %s33, 0
      %p254 = por %p252, %p253
      %s256 = sadd.s32 %s255, 1
      %p259 = scmp.eq.s32.totalorder %s27, 1
      %p260 = scmp.ne.s32.totalorder %s255, %s257
      %p261 = scmp.eq.s32.totalorder %s27, 0
      %p262 = por %p260, %p261
      %p263 = scmp.ne.s32.totalorder %s255, %s257
      %p264 = scmp.eq.s32.totalorder %s32, 1
      %p265 = por %p263, %p264
      %p266 = scmp.ne.s32.totalorder %s257, %s258
      %p267 = scmp.eq.s32.totalorder %s32, 0
      %p268 = por %p266, %p267
      %p269 = scmp.ne.s32.totalorder %s257, %s258
      %p270 = scmp.eq.s32.totalorder %s33, 1
      %p271 = por %p269, %p270
      %p273 = scmp.ne.s32.totalorder %s258, %s272
      %p274 = scmp.eq.s32.totalorder %s33, 0
      %p275 = por %p273, %p274
      %s277 = sadd.s32 %s276, 1
      %p280 = scmp.eq.s32.totalorder %s27, 1
      %p281 = scmp.ne.s32.totalorder %s276, %s278
      %p282 = scmp.eq.s32.totalorder %s27, 0
      %p283 = por %p281, %p282
      %p284 = scmp.ne.s32.totalorder %s276, %s278
      %p285 = scmp.eq.s32.totalorder %s32, 1
      %p286 = por %p284, %p285
      %p287 = scmp.ne.s32.totalorder %s278, %s279
      %p288 = scmp.eq.s32.totalorder %s32, 0
      %p289 = por %p287, %p288
      %p290 = scmp.ne.s32.totalorder %s278, %s279
      %p291 = scmp.eq.s32.totalorder %s33, 1
      %p292 = por %p290, %p291
      %p294 = scmp.ne.s32.totalorder %s279, %s293
      %p295 = scmp.eq.s32.totalorder %s33, 0
      %p296 = por %p294, %p295
      %s298 = sadd.s32 %s297, 1
      %p301 = scmp.eq.s32.totalorder %s27, 1
      %p302 = scmp.ne.s32.totalorder %s297, %s299
      %p303 = scmp.eq.s32.totalorder %s27, 0
      %p304 = por %p302, %p303
      %p305 = scmp.ne.s32.totalorder %s297, %s299
      %p306 = scmp.eq.s32.totalorder %s32, 1
      %p307 = por %p305, %p306
      %p308 = scmp.ne.s32.totalorder %s299, %s300
      %p309 = scmp.eq.s32.totalorder %s32, 0
      %p310 = por %p308, %p309
      %p311 = scmp.ne.s32.totalorder %s299, %s300
      %p312 = scmp.eq.s32.totalorder %s33, 1
      %p313 = por %p311, %p312
      %p315 = scmp.ne.s32.totalorder %s300, %s314
      %p316 = scmp.eq.s32.totalorder %s33, 0
      %p317 = por %p315, %p316
      %s319 = sadd.s32 %s318, 1
      %p322 = scmp.eq.s32.totalorder %s27, 1
      %p323 = scmp.ne.s32.totalorder %s318, %s320
      %p324 = scmp.eq.s32.totalorder %s27, 0
      %p325 = por %p323, %p324
      %p326 = scmp.ne.s32.totalorder %s318, %s320
      %p327 = scmp.eq.s32.totalorder %s32, 1
      %p328 = por %p326, %p327
      %p329 = scmp.ne.s32.totalorder %s320, %s321
      %p330 = scmp.eq.s32.totalorder %s32, 0
      %p331 = por %p329, %p330
      %p332 = scmp.ne.s32.totalorder %s320, %s321
      %p333 = scmp.eq.s32.totalorder %s33, 1
      %p334 = por %p332, %p333
      %p336 = scmp.ne.s32.totalorder %s321, %s335
      %p337 = scmp.eq.s32.totalorder %s33, 0
      %p338 = por %p336, %p337
      %s340 = sadd.s32 %s339, 1
      %p343 = scmp.eq.s32.totalorder %s27, 1
      %p344 = scmp.ne.s32.totalorder %s339, %s341
      %p345 = scmp.eq.s32.totalorder %s27, 0
      %p346 = por %p344, %p345
      %p347 = scmp.ne.s32.totalorder %s339, %s341
      %p348 = scmp.eq.s32.totalorder %s32, 1
      %p349 = por %p347, %p348
      %p350 = scmp.ne.s32.totalorder %s341, %s342
      %p351 = scmp.eq.s32.totalorder %s32, 0
      %p352 = por %p350, %p351
      %p353 = scmp.ne.s32.totalorder %s341, %s342
      %p354 = scmp.eq.s32.totalorder %s33, 1
      %p355 = por %p353, %p354
      %p357 = scmp.ne.s32.totalorder %s342, %s356
      %p358 = scmp.eq.s32.totalorder %s33, 0
      %p359 = por %p357, %p358
      %s361 = sadd.s32 %s360, 1
      %p364 = scmp.eq.s32.totalorder %s27, 1
      %p365 = scmp.ne.s32.totalorder %s360, %s362
      %p366 = scmp.eq.s32.totalorder %s27, 0
      %p367 = por %p365, %p366
      %p368 = scmp.ne.s32.totalorder %s360, %s362
      %p369 = scmp.eq.s32.totalorder %s32, 1
      %p370 = por %p368, %p369
      %p371 = scmp.ne.s32.totalorder %s362, %s363
      %p372 = scmp.eq.s32.totalorder %s32, 0
      %p373 = por %p371, %p372
      %p374 = scmp.ne.s32.totalorder %s362, %s363
      %p375 = scmp.eq.s32.totalorder %s33, 1
      %p376 = por %p374, %p375
      %p378 = scmp.ne.s32.totalorder %s363, %s377
      %p379 = scmp.eq.s32.totalorder %s33, 0
      %p380 = por %p378, %p379
      %s382 = sadd.s32 %s381, 1
      %p385 = scmp.eq.s32.totalorder %s27, 1
      %p386 = scmp.ne.s32.totalorder %s381, %s383
      %p387 = scmp.eq.s32.totalorder %s27, 0
      %p388 = por %p386, %p387
      %p389 = scmp.ne.s32.totalorder %s381, %s383
      %p390 = scmp.eq.s32.totalorder %s32, 1
      %p391 = por %p389, %p390
      %p392 = scmp.ne.s32.totalorder %s383, %s384
      %p393 = scmp.eq.s32.totalorder %s32, 0
      %p394 = por %p392, %p393
      %p395 = scmp.ne.s32.totalorder %s383, %s384
      %p396 = scmp.eq.s32.totalorder %s33, 1
      %p397 = por %p395, %p396
      %p399 = scmp.ne.s32.totalorder %s384, %s398
      %p400 = scmp.eq.s32.totalorder %s33, 0
      %p401 = por %p399, %p400
      %s403 = sadd.s32 %s402, 1
      %p406 = scmp.eq.s32.totalorder %s27, 1
      %p407 = scmp.ne.s32.totalorder %s402, %s404
      %p408 = scmp.eq.s32.totalorder %s27, 0
      %p409 = por %p407, %p408
      %p410 = scmp.ne.s32.totalorder %s402, %s404
      %p411 = scmp.eq.s32.totalorder %s32, 1
      %p412 = por %p410, %p411
      %p413 = scmp.ne.s32.totalorder %s404, %s405
      %p414 = scmp.eq.s32.totalorder %s32, 0
      %p415 = por %p413, %p414
      %p416 = scmp.ne.s32.totalorder %s404, %s405
      %p417 = scmp.eq.s32.totalorder %s33, 1
      %p418 = por %p416, %p417
      %p420 = scmp.ne.s32.totalorder %s405, %s419
      %p421 = scmp.eq.s32.totalorder %s33, 0
      %p422 = por %p420, %p421
      %s423 = ssub.s32 %s27, %s34
      %p424 = scmp.eq.s32.totalorder %s423, 0
      %s426 = sadd.s32 %s425, 1
      %s427 = scalar_select %p424, %s425, %s426
      %p430 = pneg %p424
      %p431 = scmp.eq.s32.totalorder %s27, 1
      %p432 = por %p430, %p431
      %p433 = scmp.ne.s32.totalorder %s425, %s428
      %p434 = scmp.eq.s32.totalorder %s27, 0
      %p435 = por %p433, %p434
      %p436 = scmp.ne.s32.totalorder %s425, %s428
      %p437 = scmp.eq.s32.totalorder %s32, 1
      %p438 = por %p436, %p437
      %p439 = scmp.ne.s32.totalorder %s428, %s429
      %p440 = scmp.eq.s32.totalorder %s32, 0
      %p441 = por %p439, %p440
      %p442 = scmp.ne.s32.totalorder %s428, %s429
      %p443 = scmp.eq.s32.totalorder %s33, 1
      %p444 = por %p442, %p443
      %p446 = scmp.ne.s32.totalorder %s429, %s445
      %p447 = scmp.eq.s32.totalorder %s33, 0
      %p448 = por %p446, %p447
      %p449 = scmp.le.s32.totalorder 1, %s27
      %p450 = scmp.lt.s32.totalorder %s27, 3
      %p451 = pnand %p449, %p450
      %p452 = pneg %p451
      // Predicated region
      $region9: #{tpu_custom_call.1} parent=5 // pred_check
        _
      $region10: #{tpu_custom_call.1} parent=5 // pred_check_branch
        %454 = sbr.rel (%p451) target = $region12
      $region11: #{tpu_custom_call.1} parent=5 // pred_region
        %s455 = ssub.s32 %s27, 1
        // Predicated region
        $region13: #{tpu_custom_call.1} parent=11 // pred_check
          %p456 = pneg %p100
        $region14: #{tpu_custom_call.1} parent=11 // pred_check_branch
          %458 = sbr.rel (%p456) target = $region16
        $region15: #{tpu_custom_call.1} parent=11 // pred_region
          _
        $region16: #{tpu_custom_call.1} parent=11 // pred_fallthru
          _
        // Predicated region
        $region17: #{tpu_custom_call.1} parent=11 // pred_check
          %p459 = pneg %p121
        $region18: #{tpu_custom_call.1} parent=11 // pred_check_branch
          %461 = sbr.rel (%p459) target = $region20
        $region19: #{tpu_custom_call.1} parent=11 // pred_region
          _
        $region20: #{tpu_custom_call.1} parent=11 // pred_fallthru
          _
        // Predicated region
        $region21: #{tpu_custom_call.1} parent=11 // pred_check
          %p462 = pneg %p142
        $region22: #{tpu_custom_call.1} parent=11 // pred_check_branch
          %464 = sbr.rel (%p462) target = $region24
        $region23: #{tpu_custom_call.1} parent=11 // pred_region
          _
        $region24: #{tpu_custom_call.1} parent=11 // pred_fallthru
          _
        // Predicated region
        $region25: #{tpu_custom_call.1} parent=11 // pred_check
          %p465 = pneg %p163
        $region26: #{tpu_custom_call.1} parent=11 // pred_check_branch
          %467 = sbr.rel (%p465) target = $region28
        $region27: #{tpu_custom_call.1} parent=11 // pred_region
          _
        $region28: #{tpu_custom_call.1} parent=11 // pred_fallthru
          _
        // Predicated region
        $region29: #{tpu_custom_call.1} parent=11 // pred_check
          %p468 = pneg %p184
        $region30: #{tpu_custom_call.1} parent=11 // pred_check_branch
          %470 = sbr.rel (%p468) target = $region32
        $region31: #{tpu_custom_call.1} parent=11 // pred_region
          _
        $region32: #{tpu_custom_call.1} parent=11 // pred_fallthru
          _
        // Predicated region
        $region33: #{tpu_custom_call.1} parent=11 // pred_check
          %p471 = pneg %p205
        $region34: #{tpu_custom_call.1} parent=11 // pred_check_branch
          %473 = sbr.rel (%p471) target = $region36
        $region35: #{tpu_custom_call.1} parent=11 // pred_region
          _
        $region36: #{tpu_custom_call.1} parent=11 // pred_fallthru
          _
        // Predicated region
        $region37: #{tpu_custom_call.1} parent=11 // pred_check
          %p474 = pneg %p226
        $region38: #{tpu_custom_call.1} parent=11 // pred_check_branch
          %476 = sbr.rel (%p474) target = $region40
        $region39: #{tpu_custom_call.1} parent=11 // pred_region
          _
        $region40: #{tpu_custom_call.1} parent=11 // pred_fallthru
          _
        // Predicated region
        $region41: #{tpu_custom_call.1} parent=11 // pred_check
          %p477 = pneg %p247
        $region42: #{tpu_custom_call.1} parent=11 // pred_check_branch
          %479 = sbr.rel (%p477) target = $region44
        $region43: #{tpu_custom_call.1} parent=11 // pred_region
          _
        $region44: #{tpu_custom_call.1} parent=11 // pred_fallthru
          _
        // Predicated region
        $region45: #{tpu_custom_call.1} parent=11 // pred_check
          %p480 = pneg %p268
        $region46: #{tpu_custom_call.1} parent=11 // pred_check_branch
          %482 = sbr.rel (%p480) target = $region48
        $region47: #{tpu_custom_call.1} parent=11 // pred_region
          _
        $region48: #{tpu_custom_call.1} parent=11 // pred_fallthru
          _
        // Predicated region
        $region49: #{tpu_custom_call.1} parent=11 // pred_check
          %p483 = pneg %p289
        $region50: #{tpu_custom_call.1} parent=11 // pred_check_branch
          %485 = sbr.rel (%p483) target = $region52
        $region51: #{tpu_custom_call.1} parent=11 // pred_region
          _
        $region52: #{tpu_custom_call.1} parent=11 // pred_fallthru
          _
        // Predicated region
        $region53: #{tpu_custom_call.1} parent=11 // pred_check
          %p486 = pneg %p310
        $region54: #{tpu_custom_call.1} parent=11 // pred_check_branch
          %488 = sbr.rel (%p486) target = $region56
        $region55: #{tpu_custom_call.1} parent=11 // pred_region
          _
        $region56: #{tpu_custom_call.1} parent=11 // pred_fallthru
          _
        // Predicated region
        $region57: #{tpu_custom_call.1} parent=11 // pred_check
          %p489 = pneg %p331
        $region58: #{tpu_custom_call.1} parent=11 // pred_check_branch
          %491 = sbr.rel (%p489) target = $region60
        $region59: #{tpu_custom_call.1} parent=11 // pred_region
          _
        $region60: #{tpu_custom_call.1} parent=11 // pred_fallthru
          _
        // Predicated region
        $region61: #{tpu_custom_call.1} parent=11 // pred_check
          %p492 = pneg %p352
        $region62: #{tpu_custom_call.1} parent=11 // pred_check_branch
          %494 = sbr.rel (%p492) target = $region64
        $region63: #{tpu_custom_call.1} parent=11 // pred_region
          _
        $region64: #{tpu_custom_call.1} parent=11 // pred_fallthru
          _
        // Predicated region
        $region65: #{tpu_custom_call.1} parent=11 // pred_check
          %p495 = pneg %p373
        $region66: #{tpu_custom_call.1} parent=11 // pred_check_branch
          %497 = sbr.rel (%p495) target = $region68
        $region67: #{tpu_custom_call.1} parent=11 // pred_region
          _
        $region68: #{tpu_custom_call.1} parent=11 // pred_fallthru
          _
        // Predicated region
        $region69: #{tpu_custom_call.1} parent=11 // pred_check
          %p498 = pneg %p394
        $region70: #{tpu_custom_call.1} parent=11 // pred_check_branch
          %500 = sbr.rel (%p498) target = $region72
        $region71: #{tpu_custom_call.1} parent=11 // pred_region
          _
        $region72: #{tpu_custom_call.1} parent=11 // pred_fallthru
          _
        // Predicated region
        $region73: #{tpu_custom_call.1} parent=11 // pred_check
          %p501 = pneg %p415
        $region74: #{tpu_custom_call.1} parent=11 // pred_check_branch
          %503 = sbr.rel (%p501) target = $region76
        $region75: #{tpu_custom_call.1} parent=11 // pred_region
          _
        $region76: #{tpu_custom_call.1} parent=11 // pred_fallthru
          _
      $region12: #{tpu_custom_call.1} parent=5 // pred_fallthru
        _
      %p504 = scmp.lt.s32.totalorder %s27, 2
      // Predicated region
      $region77: #{tpu_custom_call.1} parent=5 // pred_check
        %p505 = pneg %p504
      $region78: #{tpu_custom_call.1} parent=5 // pred_check_branch
        %507 = sbr.rel (%p505) target = $region80
      $region79: #{tpu_custom_call.1} parent=5 // pred_region
        // Predicated region
        $region81: #{tpu_custom_call.1} parent=79 // pred_check
          %p508 = pneg %p47
        $region82: #{tpu_custom_call.1} parent=79 // pred_check_branch
          %510 = sbr.rel (%p508) target = $region84
        $region83: #{tpu_custom_call.1} parent=79 // pred_region
          %s511 = smul.u32 16, %s27
          %p512 = scmp.lt.s32.totalorder %s511, 31
          %s513 = scalar_select %p512, %s511, 31
          %s514 = smul.addr %s513, 8
          %s515 = scalar_lea.vmem %s0, %s514
          %s516 = smul.u32 16, %s27
        $region84: #{tpu_custom_call.1} parent=79 // pred_fallthru
          _
        // Predicated region
        $region85: #{tpu_custom_call.1} parent=79 // pred_check
          %p517 = pneg %p73
        $region86: #{tpu_custom_call.1} parent=79 // pred_check_branch
          %519 = sbr.rel (%p517) target = $region88
        $region87: #{tpu_custom_call.1} parent=79 // pred_region
          %s520 = smul.u32 16, %s27
          %p521 = scmp.lt.s32.totalorder %s520, 31
          %s522 = scalar_select %p521, %s520, 31
          %s523 = smul.addr %s522, 8
          %s524 = scalar_lea.vmem %s1, %s523
          %s525 = smul.u32 16, %s27
        $region88: #{tpu_custom_call.1} parent=79 // pred_fallthru
          _
      $region80: #{tpu_custom_call.1} parent=5 // pred_fallthru
        _
      %p526 = scmp.le.s32.totalorder 1, %s27
      %p527 = scmp.lt.s32.totalorder %s27, 3
      %p528 = pnand %p526, %p527
      %p529 = pneg %p528
      // Predicated region
      $region89: #{tpu_custom_call.1} parent=5 // pred_check
        _
      $region90: #{tpu_custom_call.1} parent=5 // pred_check_branch
        %531 = sbr.rel (%p528) target = $region92
      $region91: #{tpu_custom_call.1} parent=5 // pred_region
        %s532 = ssub.s32 %s27, 1
        %s533 = smul.u32 16, %s32
        %p534 = scmp.lt.s32.totalorder %s533, 31
        %s535 = scalar_select %p534, %s533, 31
        %s536 = smul.addr %s535, 8
        %s537 = scalar_lea.vmem %s0, %s536
        %p538 = pneg %p53
        %p539 = pneg %p50
        %s540 = smul.u32 16, %s32
        %p541 = scmp.lt.s32.totalorder %s540, 31
        %s542 = scalar_select %p541, %s540, 31
        %s543 = smul.addr %s542, 8
        %s544 = scalar_lea.vmem %s1, %s543
        %p545 = pneg %p79
        %p546 = pneg %p76
        %p547 = pneg %p100
        %p548 = pneg %p97
        %p549 = pneg %p121
        %p550 = pneg %p118
        %p551 = pneg %p142
        %p552 = pneg %p139
        %p553 = pneg %p163
        %p554 = pneg %p160
        %p555 = pneg %p184
        %p556 = pneg %p181
        %p557 = pneg %p205
        %p558 = pneg %p202
        %p559 = pneg %p226
        %p560 = pneg %p223
        %p561 = pneg %p247
        %p562 = pneg %p244
        %p563 = pneg %p268
        %p564 = pneg %p265
        %p565 = pneg %p289
        %p566 = pneg %p286
        %p567 = pneg %p310
        %p568 = pneg %p307
        %p569 = pneg %p331
        %p570 = pneg %p328
        %p571 = pneg %p352
        %p572 = pneg %p349
        %p573 = pneg %p373
        %p574 = pneg %p370
        %p575 = pneg %p394
        %p576 = pneg %p391
        %p577 = pneg %p415
        %p578 = pneg %p412
        %p579 = pneg %p441
        %p580 = pneg %p438
        %s581 = sand.u32 %s428, 1
        %s582 = scalar_lea.sflag [#allocation3], %s581
        %s583 = sand.u32 %s428, 1
        %s584 = smul.addr %s583, 128
        %s585 = scalar_lea.vmem [#allocation2], %s584
        %s586 = smul.u32 16, %s32
        %p587 = scmp.lt.s32.totalorder %s586, 31
        %s588 = scalar_select %p587, %s586, 31
        %s589 = smul.addr %s588, 8
        %s590 = scalar_lea.vmem %s0, %s589
        %s591 = smul.u32 16, %s32
        %s592 = smul.u32 16, %s32
        %p593 = scmp.lt.s32.totalorder %s592, 31
        %s594 = scalar_select %p593, %s592, 31
        %s595 = smul.addr %s594, 8
        %s596 = scalar_lea.vmem %s1, %s595
        %s597 = smul.u32 16, %s32
        %s598 = smul.u32 16, %s32
        %v599 = vld [vmem:[%s590] sm:$0xff]
        %v600 = vld [vmem:[%s590 + $0x8] sm:$0xff]
        %v601 = vld [vmem:[%s590 + $0x10] sm:$0xff]
        %v602 = vld [vmem:[%s590 + $0x18] sm:$0xff]
        %v603 = vld [vmem:[%s590 + $0x20] sm:$0xff]
        %v604 = vld [vmem:[%s590 + $0x28] sm:$0xff]
        %v605 = vld [vmem:[%s590 + $0x30] sm:$0xff]
        %v606 = vld [vmem:[%s590 + $0x38] sm:$0xff]
        %v607 = vld [vmem:[%s590 + $0x40] sm:$0xff]
        %v608 = vld [vmem:[%s590 + $0x48] sm:$0xff]
        %v609 = vld [vmem:[%s590 + $0x50] sm:$0xff]
        %v610 = vld [vmem:[%s590 + $0x58] sm:$0xff]
        %v611 = vld [vmem:[%s590 + $0x60] sm:$0xff]
        %v612 = vld [vmem:[%s590 + $0x68] sm:$0xff]
        %v613 = vld [vmem:[%s590 + $0x70] sm:$0xff]
        %v614 = vld [vmem:[%s590 + $0x78] sm:$0xff]
        %v615 = vld [vmem:[%s596] sm:$0xff]
        %v616 = vld [vmem:[%s596 + $0x8] sm:$0xff]
        %v617 = vld [vmem:[%s596 + $0x10] sm:$0xff]
        %v618 = vld [vmem:[%s596 + $0x18] sm:$0xff]
        %v619 = vld [vmem:[%s596 + $0x20] sm:$0xff]
        %v620 = vld [vmem:[%s596 + $0x28] sm:$0xff]
        %v621 = vld [vmem:[%s596 + $0x30] sm:$0xff]
        %v622 = vld [vmem:[%s596 + $0x38] sm:$0xff]
        %v623 = vld [vmem:[%s596 + $0x40] sm:$0xff]
        %v624 = vld [vmem:[%s596 + $0x48] sm:$0xff]
        %v625 = vld [vmem:[%s596 + $0x50] sm:$0xff]
        %v626 = vld [vmem:[%s596 + $0x58] sm:$0xff]
        %v627 = vld [vmem:[%s596 + $0x60] sm:$0xff]
        %v628 = vld [vmem:[%s596 + $0x68] sm:$0xff]
        %v629 = vld [vmem:[%s596 + $0x70] sm:$0xff]
        %v630 = vld [vmem:[%s596 + $0x78] sm:$0xff]
        %v631 = vld [vmem:[%s2] sm:$0xff]
        %v632 = vld [vmem:[%s2 + $0x8] sm:$0xff]
        %v633 = vld [vmem:[%s2 + $0x10] sm:$0xff]
        %v634 = vld [vmem:[%s2 + $0x18] sm:$0xff]
        %v635 = vld [vmem:[%s2 + $0x20] sm:$0xff]
        %v636 = vld [vmem:[%s2 + $0x28] sm:$0xff]
        %v637 = vld [vmem:[%s2 + $0x30] sm:$0xff]
        %v638 = vld [vmem:[%s2 + $0x38] sm:$0xff]
        %v639 = vld [vmem:[%s3] sm:$0x1]
        %v641 = vlaneseq
        %v642 = vshrl.u32 %v641, 7
        %v643 = vsub.s32 0, %v642
        %v644 = vrot.slane %v639, %v643
        %vm646 = vcmask 523264
        %v648 = vsel %vm646, %v599, 0
        %v651 = vsel %vm646, %v600, 0
        %v654 = vsel %vm646, %v601, 0
        %v657 = vsel %vm646, %v602, 0
        %v660 = vsel %vm646, %v603, 0
        %v663 = vsel %vm646, %v604, 0
        %v666 = vsel %vm646, %v605, 0
        %v669 = vsel %vm646, %v606, 0
        %v672 = vsel %vm646, %v607, 0
        %v675 = vsel %vm646, %v608, 0
        %v678 = vsel %vm646, %v609, 0
        %v681 = vsel %vm646, %v610, 0
        %v684 = vsel %vm646, %v611, 0
        %v687 = vsel %vm646, %v612, 0
        %v690 = vsel %vm646, %v613, 0
        %v693 = vsel %vm646, %v614, 0
        %695 = vmatprep.subr.mxu0 0.0
        %696 = vmatpush1.msra.mxu0 0.0
        %697 = vmatprep.subr.mxu0 0.0
        %698 = vmatpush1.msra.mxu0 0.0
        %699 = vmatprep.subr.mxu0 0.0
        %700 = vmatpush1.msra.mxu0 0.0
        %701 = vmatprep.subr.mxu0 0.0
        %702 = vmatpush1.msra.mxu0 0.0
        %703 = vmatprep.subr.mxu0 0.0
        %704 = vmatpush1.msra.mxu0 0.0
        %705 = vmatprep.subr.mxu0 0.0
        %706 = vmatpush1.msra.mxu0 0.0
        %707 = vmatprep.subr.mxu0 0.0
        %708 = vmatpush1.msra.mxu0 0.0
        %709 = vmatprep.subr.mxu0 0.0
        %710 = vmatpush1.msra.mxu0 0.0
        %711 = vmatprep.subr.mxu0 0.0
        %712 = vmatpush1.msra.mxu0 %v638
        %713 = vmatprep.subr.mxu0 0.0
        %714 = vmatpush1.msra.mxu0 %v637
        %715 = vmatprep.subr.mxu0 0.0
        %716 = vmatpush1.msra.mxu0 %v636
        %717 = vmatprep.subr.mxu0 0.0
        %718 = vmatpush1.msra.mxu0 %v635
        %719 = vmatprep.subr.mxu0 0.0
        %720 = vmatpush1.msra.mxu0 %v634
        %721 = vmatprep.subr.mxu0 0.0
        %722 = vmatpush1.msra.mxu0 %v633
        %723 = vmatprep.subr.mxu0 0.0
        %724 = vmatpush1.msra.mxu0 %v632
        %725 = vmatprep.subr.mxu0 0.0
        %726 = vmatpush1.msra.mxu0 %v631
        %727 = vmatprep.subr.mxu0 0.0
        %728 = vmatpush2.msra.mxu0 0.0
        %729 = vmatprep.subr.mxu0 0.0
        %730 = vmatpush2.msra.mxu0 0.0
        %731 = vmatprep.subr.mxu0 0.0
        %732 = vmatpush2.msra.mxu0 0.0
        %733 = vmatprep.subr.mxu0 0.0
        %734 = vmatpush2.msra.mxu0 0.0
        %735 = vmatprep.subr.mxu0 0.0
        %736 = vmatpush2.msra.mxu0 0.0
        %737 = vmatprep.subr.mxu0 0.0
        %738 = vmatpush2.msra.mxu0 0.0
        %739 = vmatprep.subr.mxu0 0.0
        %740 = vmatpush2.msra.mxu0 0.0
        %741 = vmatprep.subr.mxu0 0.0
        %742 = vmatpush2.msra.mxu0 0.0
        %743 = vmatprep.subr.mxu0 0.0
        %744 = vmatpush2.msra.mxu0 0.0
        %745 = vmatprep.subr.mxu0 0.0
        %746 = vmatpush2.msra.mxu0 0.0
        %747 = vmatprep.subr.mxu0 0.0
        %748 = vmatpush2.msra.mxu0 0.0
        %749 = vmatprep.subr.mxu0 0.0
        %750 = vmatpush2.msra.mxu0 0.0
        %751 = vmatprep.subr.mxu0 0.0
        %752 = vmatpush2.msra.mxu0 0.0
        %753 = vmatprep.subr.mxu0 0.0
        %754 = vmatpush2.msra.mxu0 0.0
        %755 = vmatprep.subr.mxu0 0.0
        %756 = vmatpush2.msra.mxu0 0.0
        %757 = vmatprep.subr.mxu0 0.0
        %758 = vmatpush2.msra.mxu0 0.0
        %759 = vmatprep.mubr.f32.mxu0 0.0
        %760 = vmatmul.mubr.f32.gmra.mxu0 %v648
        %v761 = vpop.f32.mrf.mxu0
        %v762 = vadd.f32 %v644, %v761
        %v763 = vpop.f32.mrf.mxu0
        %764 = vmatprep.mubr.f32.mxu0 0.0
        %765 = vmatmul.mubr.f32.gmra.mxu0 %v651
        %v766 = vpop.f32.mrf.mxu0
        %v767 = vadd.f32 %v644, %v766
        %v768 = vpop.f32.mrf.mxu0
        %769 = vmatprep.mubr.f32.mxu0 0.0
        %770 = vmatmul.mubr.f32.gmra.mxu0 %v654
        %v771 = vpop.f32.mrf.mxu0
        %v772 = vadd.f32 %v644, %v771
        %v773 = vpop.f32.mrf.mxu0
        %774 = vmatprep.mubr.f32.mxu0 0.0
        %775 = vmatmul.mubr.f32.gmra.mxu0 %v657
        %v776 = vpop.f32.mrf.mxu0
        %v777 = vadd.f32 %v644, %v776
        %v778 = vpop.f32.mrf.mxu0
        %779 = vmatprep.mubr.f32.mxu0 0.0
        %780 = vmatmul.mubr.f32.gmra.mxu0 %v660
        %v781 = vpop.f32.mrf.mxu0
        %v782 = vadd.f32 %v644, %v781
        %v783 = vpop.f32.mrf.mxu0
        %784 = vmatprep.mubr.f32.mxu0 0.0
        %785 = vmatmul.mubr.f32.gmra.mxu0 %v663
        %v786 = vpop.f32.mrf.mxu0
        %v787 = vadd.f32 %v644, %v786
        %v788 = vpop.f32.mrf.mxu0
        %789 = vmatprep.mubr.f32.mxu0 0.0
        %790 = vmatmul.mubr.f32.gmra.mxu0 %v666
        %v791 = vpop.f32.mrf.mxu0
        %v792 = vadd.f32 %v644, %v791
        %v793 = vpop.f32.mrf.mxu0
        %794 = vmatprep.mubr.f32.mxu0 0.0
        %795 = vmatmul.mubr.f32.gmra.mxu0 %v669
        %v796 = vpop.f32.mrf.mxu0
        %v797 = vadd.f32 %v644, %v796
        %v798 = vpop.f32.mrf.mxu0
        %799 = vmatprep.mubr.f32.mxu0 0.0
        %800 = vmatmul.mubr.f32.gmra.mxu0 %v672
        %v801 = vpop.f32.mrf.mxu0
        %v802 = vadd.f32 %v644, %v801
        %v803 = vpop.f32.mrf.mxu0
        %804 = vmatprep.mubr.f32.mxu0 0.0
        %805 = vmatmul.mubr.f32.gmra.mxu0 %v675
        %v806 = vpop.f32.mrf.mxu0
        %v807 = vadd.f32 %v644, %v806
        %v808 = vpop.f32.mrf.mxu0
        %809 = vmatprep.mubr.f32.mxu0 0.0
        %810 = vmatmul.mubr.f32.gmra.mxu0 %v678
        %v811 = vpop.f32.mrf.mxu0
        %v812 = vadd.f32 %v644, %v811
        %v813 = vpop.f32.mrf.mxu0
        %814 = vmatprep.mubr.f32.mxu0 0.0
        %815 = vmatmul.mubr.f32.gmra.mxu0 %v681
        %v816 = vpop.f32.mrf.mxu0
        %v817 = vadd.f32 %v644, %v816
        %v818 = vpop.f32.mrf.mxu0
        %819 = vmatprep.mubr.f32.mxu0 0.0
        %820 = vmatmul.mubr.f32.gmra.mxu0 %v684
        %v821 = vpop.f32.mrf.mxu0
        %v822 = vadd.f32 %v644, %v821
        %v823 = vpop.f32.mrf.mxu0
        %824 = vmatprep.mubr.f32.mxu0 0.0
        %825 = vmatmul.mubr.f32.gmra.mxu0 %v687
        %v826 = vpop.f32.mrf.mxu0
        %v827 = vadd.f32 %v644, %v826
        %v828 = vpop.f32.mrf.mxu0
        %829 = vmatprep.mubr.f32.mxu0 0.0
        %830 = vmatmul.mubr.f32.gmra.mxu0 %v690
        %v831 = vpop.f32.mrf.mxu0
        %v832 = vadd.f32 %v644, %v831
        %v833 = vpop.f32.mrf.mxu0
        %834 = vmatprep.mubr.f32.mxu0 0.0
        %835 = vmatmul.mubr.f32.gmra.mxu0 %v693
        %v836 = vpop.f32.mrf.mxu0
        %v837 = vadd.f32 %v644, %v836
        %v838 = vpop.f32.mrf.mxu0
        %839 = vdwg.mxu0
        %v840 = vmax.f32 %v762, 0.0
        %v841 = vmax.f32 %v767, 0.0
        %v842 = vmax.f32 %v772, 0.0
        %v843 = vmax.f32 %v777, 0.0
        %v844 = vmax.f32 %v782, 0.0
        %v845 = vmax.f32 %v787, 0.0
        %v846 = vmax.f32 %v792, 0.0
        %v847 = vmax.f32 %v797, 0.0
        %v848 = vmax.f32 %v802, 0.0
        %v849 = vmax.f32 %v807, 0.0
        %v850 = vmax.f32 %v812, 0.0
        %v851 = vmax.f32 %v817, 0.0
        %v852 = vmax.f32 %v822, 0.0
        %v853 = vmax.f32 %v827, 0.0
        %v854 = vmax.f32 %v832, 0.0
        %v855 = vmax.f32 %v837, 0.0
        %v856 = vld [vmem:[%s4] sm:$0xff]
        %v857 = vld [vmem:[%s4 + $0x8] sm:$0xff]
        %v858 = vld [vmem:[%s4 + $0x10] sm:$0xff]
        %v859 = vld [vmem:[%s4 + $0x18] sm:$0xff]
        %v860 = vld [vmem:[%s5] sm:$0x1]
        %v862 = vlaneseq
        %v863 = vshrl.u32 %v862, 7
        %v864 = vsub.s32 0, %v863
        %v865 = vrot.slane %v860, %v864
        %vm867 = vcmask 261120
        %v869 = vsel %vm867, %v840, 0
        %v872 = vsel %vm867, %v841, 0
        %v875 = vsel %vm867, %v842, 0
        %v878 = vsel %vm867, %v843, 0
        %v881 = vsel %vm867, %v844, 0
        %v884 = vsel %vm867, %v845, 0
        %v887 = vsel %vm867, %v846, 0
        %v890 = vsel %vm867, %v847, 0
        %v893 = vsel %vm867, %v848, 0
        %v896 = vsel %vm867, %v849, 0
        %v899 = vsel %vm867, %v850, 0
        %v902 = vsel %vm867, %v851, 0
        %v905 = vsel %vm867, %v852, 0
        %v908 = vsel %vm867, %v853, 0
        %v911 = vsel %vm867, %v854, 0
        %v914 = vsel %vm867, %v855, 0
        %916 = vmatprep.subr.mxu0 0.0
        %917 = vmatpush1.msra.mxu0 0.0
        %918 = vmatprep.subr.mxu0 0.0
        %919 = vmatpush1.msra.mxu0 0.0
        %920 = vmatprep.subr.mxu0 0.0
        %921 = vmatpush1.msra.mxu0 0.0
        %922 = vmatprep.subr.mxu0 0.0
        %923 = vmatpush1.msra.mxu0 0.0
        %924 = vmatprep.subr.mxu0 0.0
        %925 = vmatpush1.msra.mxu0 0.0
        %926 = vmatprep.subr.mxu0 0.0
        %927 = vmatpush1.msra.mxu0 0.0
        %928 = vmatprep.subr.mxu0 0.0
        %929 = vmatpush1.msra.mxu0 0.0
        %930 = vmatprep.subr.mxu0 0.0
        %931 = vmatpush1.msra.mxu0 0.0
        %932 = vmatprep.subr.mxu0 0.0
        %933 = vmatpush1.msra.mxu0 0.0
        %934 = vmatprep.subr.mxu0 0.0
        %935 = vmatpush1.msra.mxu0 0.0
        %936 = vmatprep.subr.mxu0 0.0
        %937 = vmatpush1.msra.mxu0 0.0
        %938 = vmatprep.subr.mxu0 0.0
        %939 = vmatpush1.msra.mxu0 0.0
        %940 = vmatprep.subr.mxu0 0.0
        %941 = vmatpush1.msra.mxu0 %v859
        %942 = vmatprep.subr.mxu0 0.0
        %943 = vmatpush1.msra.mxu0 %v858
        %944 = vmatprep.subr.mxu0 0.0
        %945 = vmatpush1.msra.mxu0 %v857
        %946 = vmatprep.subr.mxu0 0.0
        %947 = vmatpush1.msra.mxu0 %v856
        %948 = vmatprep.subr.mxu0 0.0
        %949 = vmatpush2.msra.mxu0 0.0
        %950 = vmatprep.subr.mxu0 0.0
        %951 = vmatpush2.msra.mxu0 0.0
        %952 = vmatprep.subr.mxu0 0.0
        %953 = vmatpush2.msra.mxu0 0.0
        %954 = vmatprep.subr.mxu0 0.0
        %955 = vmatpush2.msra.mxu0 0.0
        %956 = vmatprep.subr.mxu0 0.0
        %957 = vmatpush2.msra.mxu0 0.0
        %958 = vmatprep.subr.mxu0 0.0
        %959 = vmatpush2.msra.mxu0 0.0
        %960 = vmatprep.subr.mxu0 0.0
        %961 = vmatpush2.msra.mxu0 0.0
        %962 = vmatprep.subr.mxu0 0.0
        %963 = vmatpush2.msra.mxu0 0.0
        %964 = vmatprep.subr.mxu0 0.0
        %965 = vmatpush2.msra.mxu0 0.0
        %966 = vmatprep.subr.mxu0 0.0
        %967 = vmatpush2.msra.mxu0 0.0
        %968 = vmatprep.subr.mxu0 0.0
        %969 = vmatpush2.msra.mxu0 0.0
        %970 = vmatprep.subr.mxu0 0.0
        %971 = vmatpush2.msra.mxu0 0.0
        %972 = vmatprep.subr.mxu0 0.0
        %973 = vmatpush2.msra.mxu0 0.0
        %974 = vmatprep.subr.mxu0 0.0
        %975 = vmatpush2.msra.mxu0 0.0
        %976 = vmatprep.subr.mxu0 0.0
        %977 = vmatpush2.msra.mxu0 0.0
        %978 = vmatprep.subr.mxu0 0.0
        %979 = vmatpush2.msra.mxu0 0.0
        %980 = vmatprep.mubr.f32.mxu0 0.0
        %981 = vmatmul.mubr.f32.gmra.mxu0 %v869
        %v982 = vpop.f32.mrf.mxu0
        %v983 = vadd.f32 %v865, %v982
        %v984 = vpop.f32.mrf.mxu0
        %985 = vmatprep.mubr.f32.mxu0 0.0
        %986 = vmatmul.mubr.f32.gmra.mxu0 %v872
        %v987 = vpop.f32.mrf.mxu0
        %v988 = vadd.f32 %v865, %v987
        %v989 = vpop.f32.mrf.mxu0
        %990 = vmatprep.mubr.f32.mxu0 0.0
        %991 = vmatmul.mubr.f32.gmra.mxu0 %v875
        %v992 = vpop.f32.mrf.mxu0
        %v993 = vadd.f32 %v865, %v992
        %v994 = vpop.f32.mrf.mxu0
        %995 = vmatprep.mubr.f32.mxu0 0.0
        %996 = vmatmul.mubr.f32.gmra.mxu0 %v878
        %v997 = vpop.f32.mrf.mxu0
        %v998 = vadd.f32 %v865, %v997
        %v999 = vpop.f32.mrf.mxu0
        %1000 = vmatprep.mubr.f32.mxu0 0.0
        %1001 = vmatmul.mubr.f32.gmra.mxu0 %v881
        %v1002 = vpop.f32.mrf.mxu0
        %v1003 = vadd.f32 %v865, %v1002
        %v1004 = vpop.f32.mrf.mxu0
        %1005 = vmatprep.mubr.f32.mxu0 0.0
        %1006 = vmatmul.mubr.f32.gmra.mxu0 %v884
        %v1007 = vpop.f32.mrf.mxu0
        %v1008 = vadd.f32 %v865, %v1007
        %v1009 = vpop.f32.mrf.mxu0
        %1010 = vmatprep.mubr.f32.mxu0 0.0
        %1011 = vmatmul.mubr.f32.gmra.mxu0 %v887
        %v1012 = vpop.f32.mrf.mxu0
        %v1013 = vadd.f32 %v865, %v1012
        %v1014 = vpop.f32.mrf.mxu0
        %1015 = vmatprep.mubr.f32.mxu0 0.0
        %1016 = vmatmul.mubr.f32.gmra.mxu0 %v890
        %v1017 = vpop.f32.mrf.mxu0
        %v1018 = vadd.f32 %v865, %v1017
        %v1019 = vpop.f32.mrf.mxu0
        %1020 = vmatprep.mubr.f32.mxu0 0.0
        %1021 = vmatmul.mubr.f32.gmra.mxu0 %v893
        %v1022 = vpop.f32.mrf.mxu0
        %v1023 = vadd.f32 %v865, %v1022
        %v1024 = vpop.f32.mrf.mxu0
        %1025 = vmatprep.mubr.f32.mxu0 0.0
        %1026 = vmatmul.mubr.f32.gmra.mxu0 %v896
        %v1027 = vpop.f32.mrf.mxu0
        %v1028 = vadd.f32 %v865, %v1027
        %v1029 = vpop.f32.mrf.mxu0
        %1030 = vmatprep.mubr.f32.mxu0 0.0
        %1031 = vmatmul.mubr.f32.gmra.mxu0 %v899
        %v1032 = vpop.f32.mrf.mxu0
        %v1033 = vadd.f32 %v865, %v1032
        %v1034 = vpop.f32.mrf.mxu0
        %1035 = vmatprep.mubr.f32.mxu0 0.0
        %1036 = vmatmul.mubr.f32.gmra.mxu0 %v902
        %v1037 = vpop.f32.mrf.mxu0
        %v1038 = vadd.f32 %v865, %v1037
        %v1039 = vpop.f32.mrf.mxu0
        %1040 = vmatprep.mubr.f32.mxu0 0.0
        %1041 = vmatmul.mubr.f32.gmra.mxu0 %v905
        %v1042 = vpop.f32.mrf.mxu0
        %v1043 = vadd.f32 %v865, %v1042
        %v1044 = vpop.f32.mrf.mxu0
        %1045 = vmatprep.mubr.f32.mxu0 0.0
        %1046 = vmatmul.mubr.f32.gmra.mxu0 %v908
        %v1047 = vpop.f32.mrf.mxu0
        %v1048 = vadd.f32 %v865, %v1047
        %v1049 = vpop.f32.mrf.mxu0
        %1050 = vmatprep.mubr.f32.mxu0 0.0
        %1051 = vmatmul.mubr.f32.gmra.mxu0 %v911
        %v1052 = vpop.f32.mrf.mxu0
        %v1053 = vadd.f32 %v865, %v1052
        %v1054 = vpop.f32.mrf.mxu0
        %1055 = vmatprep.mubr.f32.mxu0 0.0
        %1056 = vmatmul.mubr.f32.gmra.mxu0 %v914
        %v1057 = vpop.f32.mrf.mxu0
        %v1058 = vadd.f32 %v865, %v1057
        %v1059 = vpop.f32.mrf.mxu0
        %1060 = vdwg.mxu0
        %v1061 = vld [vmem:[%s6] sm:$0xff]
        %v1062 = vld [vmem:[%s6 + $0x8] sm:$0xff]
        %v1063 = vld [vmem:[%s6 + $0x10] sm:$0xff]
        %v1064 = vld [vmem:[%s6 + $0x18] sm:$0xff]
        %v1065 = vld [vmem:[%s7] sm:$0x1]
        %v1067 = vlaneseq
        %v1068 = vshrl.u32 %v1067, 7
        %v1069 = vsub.s32 0, %v1068
        %v1070 = vrot.slane %v1065, %v1069
        %1072 = vmatprep.subr.mxu0 0.0
        %1073 = vmatpush1.msra.mxu0 0.0
        %1074 = vmatprep.subr.mxu0 0.0
        %1075 = vmatpush1.msra.mxu0 0.0
        %1076 = vmatprep.subr.mxu0 0.0
        %1077 = vmatpush1.msra.mxu0 0.0
        %1078 = vmatprep.subr.mxu0 0.0
        %1079 = vmatpush1.msra.mxu0 0.0
        %1080 = vmatprep.subr.mxu0 0.0
        %1081 = vmatpush1.msra.mxu0 0.0
        %1082 = vmatprep.subr.mxu0 0.0
        %1083 = vmatpush1.msra.mxu0 0.0
        %1084 = vmatprep.subr.mxu0 0.0
        %1085 = vmatpush1.msra.mxu0 0.0
        %1086 = vmatprep.subr.mxu0 0.0
        %1087 = vmatpush1.msra.mxu0 0.0
        %1088 = vmatprep.subr.mxu0 0.0
        %1089 = vmatpush1.msra.mxu0 0.0
        %1090 = vmatprep.subr.mxu0 0.0
        %1091 = vmatpush1.msra.mxu0 0.0
        %1092 = vmatprep.subr.mxu0 0.0
        %1093 = vmatpush1.msra.mxu0 0.0
        %1094 = vmatprep.subr.mxu0 0.0
        %1095 = vmatpush1.msra.mxu0 0.0
        %1096 = vmatprep.subr.mxu0 0.0
        %1097 = vmatpush1.msra.mxu0 %v1064
        %1098 = vmatprep.subr.mxu0 0.0
        %1099 = vmatpush1.msra.mxu0 %v1063
        %1100 = vmatprep.subr.mxu0 0.0
        %1101 = vmatpush1.msra.mxu0 %v1062
        %1102 = vmatprep.subr.mxu0 0.0
        %1103 = vmatpush1.msra.mxu0 %v1061
        %1104 = vmatprep.subr.mxu0 0.0
        %1105 = vmatpush2.msra.mxu0 0.0
        %1106 = vmatprep.subr.mxu0 0.0
        %1107 = vmatpush2.msra.mxu0 0.0
        %1108 = vmatprep.subr.mxu0 0.0
        %1109 = vmatpush2.msra.mxu0 0.0
        %1110 = vmatprep.subr.mxu0 0.0
        %1111 = vmatpush2.msra.mxu0 0.0
        %1112 = vmatprep.subr.mxu0 0.0
        %1113 = vmatpush2.msra.mxu0 0.0
        %1114 = vmatprep.subr.mxu0 0.0
        %1115 = vmatpush2.msra.mxu0 0.0
        %1116 = vmatprep.subr.mxu0 0.0
        %1117 = vmatpush2.msra.mxu0 0.0
        %1118 = vmatprep.subr.mxu0 0.0
        %1119 = vmatpush2.msra.mxu0 0.0
        %1120 = vmatprep.subr.mxu0 0.0
        %1121 = vmatpush2.msra.mxu0 0.0
        %1122 = vmatprep.subr.mxu0 0.0
        %1123 = vmatpush2.msra.mxu0 0.0
        %1124 = vmatprep.subr.mxu0 0.0
        %1125 = vmatpush2.msra.mxu0 0.0
        %1126 = vmatprep.subr.mxu0 0.0
        %1127 = vmatpush2.msra.mxu0 0.0
        %1128 = vmatprep.subr.mxu0 0.0
        %1129 = vmatpush2.msra.mxu0 0.0
        %1130 = vmatprep.subr.mxu0 0.0
        %1131 = vmatpush2.msra.mxu0 0.0
        %1132 = vmatprep.subr.mxu0 0.0
        %1133 = vmatpush2.msra.mxu0 0.0
        %1134 = vmatprep.subr.mxu0 0.0
        %1135 = vmatpush2.msra.mxu0 0.0
        %1136 = vmatprep.mubr.f32.mxu0 0.0
        %1137 = vmatmul.mubr.f32.gmra.mxu0 %v869
        %v1138 = vpop.f32.mrf.mxu0
        %v1139 = vadd.f32 %v1070, %v1138
        %v1140 = vpop.f32.mrf.mxu0
        %1141 = vmatprep.mubr.f32.mxu0 0.0
        %1142 = vmatmul.mubr.f32.gmra.mxu0 %v872
        %v1143 = vpop.f32.mrf.mxu0
        %v1144 = vadd.f32 %v1070, %v1143
        %v1145 = vpop.f32.mrf.mxu0
        %1146 = vmatprep.mubr.f32.mxu0 0.0
        %1147 = vmatmul.mubr.f32.gmra.mxu0 %v875
        %v1148 = vpop.f32.mrf.mxu0
        %v1149 = vadd.f32 %v1070, %v1148
        %v1150 = vpop.f32.mrf.mxu0
        %1151 = vmatprep.mubr.f32.mxu0 0.0
        %1152 = vmatmul.mubr.f32.gmra.mxu0 %v878
        %v1153 = vpop.f32.mrf.mxu0
        %v1154 = vadd.f32 %v1070, %v1153
        %v1155 = vpop.f32.mrf.mxu0
        %1156 = vmatprep.mubr.f32.mxu0 0.0
        %1157 = vmatmul.mubr.f32.gmra.mxu0 %v881
        %v1158 = vpop.f32.mrf.mxu0
        %v1159 = vadd.f32 %v1070, %v1158
        %v1160 = vpop.f32.mrf.mxu0
        %1161 = vmatprep.mubr.f32.mxu0 0.0
        %1162 = vmatmul.mubr.f32.gmra.mxu0 %v884
        %v1163 = vpop.f32.mrf.mxu0
        %v1164 = vadd.f32 %v1070, %v1163
        %v1165 = vpop.f32.mrf.mxu0
        %1166 = vmatprep.mubr.f32.mxu0 0.0
        %1167 = vmatmul.mubr.f32.gmra.mxu0 %v887
        %v1168 = vpop.f32.mrf.mxu0
        %v1169 = vadd.f32 %v1070, %v1168
        %v1170 = vpop.f32.mrf.mxu0
        %1171 = vmatprep.mubr.f32.mxu0 0.0
        %1172 = vmatmul.mubr.f32.gmra.mxu0 %v890
        %v1173 = vpop.f32.mrf.mxu0
        %v1174 = vadd.f32 %v1070, %v1173
        %v1175 = vpop.f32.mrf.mxu0
        %1176 = vmatprep.mubr.f32.mxu0 0.0
        %1177 = vmatmul.mubr.f32.gmra.mxu0 %v893
        %v1178 = vpop.f32.mrf.mxu0
        %v1179 = vadd.f32 %v1070, %v1178
        %v1180 = vpop.f32.mrf.mxu0
        %1181 = vmatprep.mubr.f32.mxu0 0.0
        %1182 = vmatmul.mubr.f32.gmra.mxu0 %v896
        %v1183 = vpop.f32.mrf.mxu0
        %v1184 = vadd.f32 %v1070, %v1183
        %v1185 = vpop.f32.mrf.mxu0
        %1186 = vmatprep.mubr.f32.mxu0 0.0
        %1187 = vmatmul.mubr.f32.gmra.mxu0 %v899
        %v1188 = vpop.f32.mrf.mxu0
        %v1189 = vadd.f32 %v1070, %v1188
        %v1190 = vpop.f32.mrf.mxu0
        %1191 = vmatprep.mubr.f32.mxu0 0.0
        %1192 = vmatmul.mubr.f32.gmra.mxu0 %v902
        %v1193 = vpop.f32.mrf.mxu0
        %v1194 = vadd.f32 %v1070, %v1193
        %v1195 = vpop.f32.mrf.mxu0
        %1196 = vmatprep.mubr.f32.mxu0 0.0
        %1197 = vmatmul.mubr.f32.gmra.mxu0 %v905
        %v1198 = vpop.f32.mrf.mxu0
        %v1199 = vadd.f32 %v1070, %v1198
        %v1200 = vpop.f32.mrf.mxu0
        %1201 = vmatprep.mubr.f32.mxu0 0.0
        %1202 = vmatmul.mubr.f32.gmra.mxu0 %v908
        %v1203 = vpop.f32.mrf.mxu0
        %v1204 = vadd.f32 %v1070, %v1203
        %v1205 = vpop.f32.mrf.mxu0
        %1206 = vmatprep.mubr.f32.mxu0 0.0
        %1207 = vmatmul.mubr.f32.gmra.mxu0 %v911
        %v1208 = vpop.f32.mrf.mxu0
        %v1209 = vadd.f32 %v1070, %v1208
        %v1210 = vpop.f32.mrf.mxu0
        %1211 = vmatprep.mubr.f32.mxu0 0.0
        %1212 = vmatmul.mubr.f32.gmra.mxu0 %v914
        %v1213 = vpop.f32.mrf.mxu0
        %v1214 = vadd.f32 %v1070, %v1213
        %v1215 = vpop.f32.mrf.mxu0
        %1216 = vdwg.mxu0
        %v1217 = vmul.f32 %v1139, 0.5
        %v1218 = vmul.f32 %v1144, 0.5
        %v1219 = vmul.f32 %v1149, 0.5
        %v1220 = vmul.f32 %v1154, 0.5
        %v1221 = vmul.f32 %v1159, 0.5
        %v1222 = vmul.f32 %v1164, 0.5
        %v1223 = vmul.f32 %v1169, 0.5
        %v1224 = vmul.f32 %v1174, 0.5
        %v1225 = vmul.f32 %v1179, 0.5
        %v1226 = vmul.f32 %v1184, 0.5
        %v1227 = vmul.f32 %v1189, 0.5
        %v1228 = vmul.f32 %v1194, 0.5
        %v1229 = vmul.f32 %v1199, 0.5
        %v1230 = vmul.f32 %v1204, 0.5
        %v1231 = vmul.f32 %v1209, 0.5
        %v1232 = vmul.f32 %v1214, 0.5
        %v1233 = vmul.f32 %v1217, 1.442695
        %v1234 = vpow.pop %v1233
        %v1235 = vmul.f32 %v1218, 1.442695
        %v1236 = vpow.pop %v1235
        %v1237 = vmul.f32 %v1219, 1.442695
        %v1238 = vpow.pop %v1237
        %v1239 = vmul.f32 %v1220, 1.442695
        %v1240 = vpow.pop %v1239
        %v1241 = vmul.f32 %v1221, 1.442695
        %v1242 = vpow.pop %v1241
        %v1243 = vmul.f32 %v1222, 1.442695
        %v1244 = vpow.pop %v1243
        %v1245 = vmul.f32 %v1223, 1.442695
        %v1246 = vpow.pop %v1245
        %v1247 = vmul.f32 %v1224, 1.442695
        %v1248 = vpow.pop %v1247
        %v1249 = vmul.f32 %v1225, 1.442695
        %v1250 = vpow.pop %v1249
        %v1251 = vmul.f32 %v1226, 1.442695
        %v1252 = vpow.pop %v1251
        %v1253 = vmul.f32 %v1227, 1.442695
        %v1254 = vpow.pop %v1253
        %v1255 = vmul.f32 %v1228, 1.442695
        %v1256 = vpow.pop %v1255
        %v1257 = vmul.f32 %v1229, 1.442695
        %v1258 = vpow.pop %v1257
        %v1259 = vmul.f32 %v1230, 1.442695
        %v1260 = vpow.pop %v1259
        %v1261 = vmul.f32 %v1231, 1.442695
        %v1262 = vpow.pop %v1261
        %v1263 = vmul.f32 %v1232, 1.442695
        %v1264 = vpow.pop %v1263
        %v1265 = vmul.f32 %v615, %v1234
        %v1266 = vmul.f32 %v616, %v1236
        %v1267 = vmul.f32 %v617, %v1238
        %v1268 = vmul.f32 %v618, %v1240
        %v1269 = vmul.f32 %v619, %v1242
        %v1270 = vmul.f32 %v620, %v1244
        %v1271 = vmul.f32 %v621, %v1246
        %v1272 = vmul.f32 %v622, %v1248
        %v1273 = vmul.f32 %v623, %v1250
        %v1274 = vmul.f32 %v624, %v1252
        %v1275 = vmul.f32 %v625, %v1254
        %v1276 = vmul.f32 %v626, %v1256
        %v1277 = vmul.f32 %v627, %v1258
        %v1278 = vmul.f32 %v628, %v1260
        %v1279 = vmul.f32 %v629, %v1262
        %v1280 = vmul.f32 %v630, %v1264
        %v1281 = vadd.f32 %v983, %v1265
        %v1282 = vadd.f32 %v988, %v1266
        %v1283 = vadd.f32 %v993, %v1267
        %v1284 = vadd.f32 %v998, %v1268
        %v1285 = vadd.f32 %v1003, %v1269
        %v1286 = vadd.f32 %v1008, %v1270
        %v1287 = vadd.f32 %v1013, %v1271
        %v1288 = vadd.f32 %v1018, %v1272
        %v1289 = vadd.f32 %v1023, %v1273
        %v1290 = vadd.f32 %v1028, %v1274
        %v1291 = vadd.f32 %v1033, %v1275
        %v1292 = vadd.f32 %v1038, %v1276
        %v1293 = vadd.f32 %v1043, %v1277
        %v1294 = vadd.f32 %v1048, %v1278
        %v1295 = vadd.f32 %v1053, %v1279
        %v1296 = vadd.f32 %v1058, %v1280
        %v1297 = vld [vmem:[%s8] sm:$0xff]
        %v1298 = vld [vmem:[%s8 + $0x8] sm:$0xff]
        %v1299 = vld [vmem:[%s9] sm:$0x1]
        %v1301 = vlaneseq
        %v1302 = vshrl.u32 %v1301, 7
        %v1303 = vsub.s32 0, %v1302
        %v1304 = vrot.slane %v1299, %v1303
        %vm1306 = vcmask 130048
        %v1308 = vsel %vm1306, %v1281, 0
        %v1311 = vsel %vm1306, %v1282, 0
        %v1314 = vsel %vm1306, %v1283, 0
        %v1317 = vsel %vm1306, %v1284, 0
        %v1320 = vsel %vm1306, %v1285, 0
        %v1323 = vsel %vm1306, %v1286, 0
        %v1326 = vsel %vm1306, %v1287, 0
        %v1329 = vsel %vm1306, %v1288, 0
        %v1332 = vsel %vm1306, %v1289, 0
        %v1335 = vsel %vm1306, %v1290, 0
        %v1338 = vsel %vm1306, %v1291, 0
        %v1341 = vsel %vm1306, %v1292, 0
        %v1344 = vsel %vm1306, %v1293, 0
        %v1347 = vsel %vm1306, %v1294, 0
        %v1350 = vsel %vm1306, %v1295, 0
        %v1353 = vsel %vm1306, %v1296, 0
        %1355 = vmatprep.subr.mxu0 0.0
        %1356 = vmatpush1.msra.mxu0 0.0
        %1357 = vmatprep.subr.mxu0 0.0
        %1358 = vmatpush1.msra.mxu0 0.0
        %1359 = vmatprep.subr.mxu0 0.0
        %1360 = vmatpush1.msra.mxu0 0.0
        %1361 = vmatprep.subr.mxu0 0.0
        %1362 = vmatpush1.msra.mxu0 0.0
        %1363 = vmatprep.subr.mxu0 0.0
        %1364 = vmatpush1.msra.mxu0 0.0
        %1365 = vmatprep.subr.mxu0 0.0
        %1366 = vmatpush1.msra.mxu0 0.0
        %1367 = vmatprep.subr.mxu0 0.0
        %1368 = vmatpush1.msra.mxu0 0.0
        %1369 = vmatprep.subr.mxu0 0.0
        %1370 = vmatpush1.msra.mxu0 0.0
        %1371 = vmatprep.subr.mxu0 0.0
        %1372 = vmatpush1.msra.mxu0 0.0
        %1373 = vmatprep.subr.mxu0 0.0
        %1374 = vmatpush1.msra.mxu0 0.0
        %1375 = vmatprep.subr.mxu0 0.0
        %1376 = vmatpush1.msra.mxu0 0.0
        %1377 = vmatprep.subr.mxu0 0.0
        %1378 = vmatpush1.msra.mxu0 0.0
        %1379 = vmatprep.subr.mxu0 0.0
        %1380 = vmatpush1.msra.mxu0 0.0
        %1381 = vmatprep.subr.mxu0 0.0
        %1382 = vmatpush1.msra.mxu0 0.0
        %1383 = vmatprep.subr.mxu0 0.0
        %1384 = vmatpush1.msra.mxu0 %v1298
        %1385 = vmatprep.subr.mxu0 0.0
        %1386 = vmatpush1.msra.mxu0 %v1297
        %1387 = vmatprep.subr.mxu0 0.0
        %1388 = vmatpush2.msra.mxu0 0.0
        %1389 = vmatprep.subr.mxu0 0.0
        %1390 = vmatpush2.msra.mxu0 0.0
        %1391 = vmatprep.subr.mxu0 0.0
        %1392 = vmatpush2.msra.mxu0 0.0
        %1393 = vmatprep.subr.mxu0 0.0
        %1394 = vmatpush2.msra.mxu0 0.0
        %1395 = vmatprep.subr.mxu0 0.0
        %1396 = vmatpush2.msra.mxu0 0.0
        %1397 = vmatprep.subr.mxu0 0.0
        %1398 = vmatpush2.msra.mxu0 0.0
        %1399 = vmatprep.subr.mxu0 0.0
        %1400 = vmatpush2.msra.mxu0 0.0
        %1401 = vmatprep.subr.mxu0 0.0
        %1402 = vmatpush2.msra.mxu0 0.0
        %1403 = vmatprep.subr.mxu0 0.0
        %1404 = vmatpush2.msra.mxu0 0.0
        %1405 = vmatprep.subr.mxu0 0.0
        %1406 = vmatpush2.msra.mxu0 0.0
        %1407 = vmatprep.subr.mxu0 0.0
        %1408 = vmatpush2.msra.mxu0 0.0
        %1409 = vmatprep.subr.mxu0 0.0
        %1410 = vmatpush2.msra.mxu0 0.0
        %1411 = vmatprep.subr.mxu0 0.0
        %1412 = vmatpush2.msra.mxu0 0.0
        %1413 = vmatprep.subr.mxu0 0.0
        %1414 = vmatpush2.msra.mxu0 0.0
        %1415 = vmatprep.subr.mxu0 0.0
        %1416 = vmatpush2.msra.mxu0 0.0
        %1417 = vmatprep.subr.mxu0 0.0
        %1418 = vmatpush2.msra.mxu0 0.0
        %1419 = vmatprep.mubr.f32.mxu0 0.0
        %1420 = vmatmul.mubr.f32.gmra.mxu0 %v1308
        %v1421 = vpop.f32.mrf.mxu0
        %v1422 = vadd.f32 %v1304, %v1421
        %v1423 = vpop.f32.mrf.mxu0
        %1424 = vmatprep.mubr.f32.mxu0 0.0
        %1425 = vmatmul.mubr.f32.gmra.mxu0 %v1311
        %v1426 = vpop.f32.mrf.mxu0
        %v1427 = vadd.f32 %v1304, %v1426
        %v1428 = vpop.f32.mrf.mxu0
        %1429 = vmatprep.mubr.f32.mxu0 0.0
        %1430 = vmatmul.mubr.f32.gmra.mxu0 %v1314
        %v1431 = vpop.f32.mrf.mxu0
        %v1432 = vadd.f32 %v1304, %v1431
        %v1433 = vpop.f32.mrf.mxu0
        %1434 = vmatprep.mubr.f32.mxu0 0.0
        %1435 = vmatmul.mubr.f32.gmra.mxu0 %v1317
        %v1436 = vpop.f32.mrf.mxu0
        %v1437 = vadd.f32 %v1304, %v1436
        %v1438 = vpop.f32.mrf.mxu0
        %1439 = vmatprep.mubr.f32.mxu0 0.0
        %1440 = vmatmul.mubr.f32.gmra.mxu0 %v1320
        %v1441 = vpop.f32.mrf.mxu0
        %v1442 = vadd.f32 %v1304, %v1441
        %v1443 = vpop.f32.mrf.mxu0
        %1444 = vmatprep.mubr.f32.mxu0 0.0
        %1445 = vmatmul.mubr.f32.gmra.mxu0 %v1323
        %v1446 = vpop.f32.mrf.mxu0
        %v1447 = vadd.f32 %v1304, %v1446
        %v1448 = vpop.f32.mrf.mxu0
        %1449 = vmatprep.mubr.f32.mxu0 0.0
        %1450 = vmatmul.mubr.f32.gmra.mxu0 %v1326
        %v1451 = vpop.f32.mrf.mxu0
        %v1452 = vadd.f32 %v1304, %v1451
        %v1453 = vpop.f32.mrf.mxu0
        %1454 = vmatprep.mubr.f32.mxu0 0.0
        %1455 = vmatmul.mubr.f32.gmra.mxu0 %v1329
        %v1456 = vpop.f32.mrf.mxu0
        %v1457 = vadd.f32 %v1304, %v1456
        %v1458 = vpop.f32.mrf.mxu0
        %1459 = vmatprep.mubr.f32.mxu0 0.0
        %1460 = vmatmul.mubr.f32.gmra.mxu0 %v1332
        %v1461 = vpop.f32.mrf.mxu0
        %v1462 = vadd.f32 %v1304, %v1461
        %v1463 = vpop.f32.mrf.mxu0
        %1464 = vmatprep.mubr.f32.mxu0 0.0
        %1465 = vmatmul.mubr.f32.gmra.mxu0 %v1335
        %v1466 = vpop.f32.mrf.mxu0
        %v1467 = vadd.f32 %v1304, %v1466
        %v1468 = vpop.f32.mrf.mxu0
        %1469 = vmatprep.mubr.f32.mxu0 0.0
        %1470 = vmatmul.mubr.f32.gmra.mxu0 %v1338
        %v1471 = vpop.f32.mrf.mxu0
        %v1472 = vadd.f32 %v1304, %v1471
        %v1473 = vpop.f32.mrf.mxu0
        %1474 = vmatprep.mubr.f32.mxu0 0.0
        %1475 = vmatmul.mubr.f32.gmra.mxu0 %v1341
        %v1476 = vpop.f32.mrf.mxu0
        %v1477 = vadd.f32 %v1304, %v1476
        %v1478 = vpop.f32.mrf.mxu0
        %1479 = vmatprep.mubr.f32.mxu0 0.0
        %1480 = vmatmul.mubr.f32.gmra.mxu0 %v1344
        %v1481 = vpop.f32.mrf.mxu0
        %v1482 = vadd.f32 %v1304, %v1481
        %v1483 = vpop.f32.mrf.mxu0
        %1484 = vmatprep.mubr.f32.mxu0 0.0
        %1485 = vmatmul.mubr.f32.gmra.mxu0 %v1347
        %v1486 = vpop.f32.mrf.mxu0
        %v1487 = vadd.f32 %v1304, %v1486
        %v1488 = vpop.f32.mrf.mxu0
        %1489 = vmatprep.mubr.f32.mxu0 0.0
        %1490 = vmatmul.mubr.f32.gmra.mxu0 %v1350
        %v1491 = vpop.f32.mrf.mxu0
        %v1492 = vadd.f32 %v1304, %v1491
        %v1493 = vpop.f32.mrf.mxu0
        %1494 = vmatprep.mubr.f32.mxu0 0.0
        %1495 = vmatmul.mubr.f32.gmra.mxu0 %v1353
        %v1496 = vpop.f32.mrf.mxu0
        %v1497 = vadd.f32 %v1304, %v1496
        %v1498 = vpop.f32.mrf.mxu0
        %1499 = vdwg.mxu0
        %v1500 = vmax.f32 %v1422, 0.0
        %v1501 = vmax.f32 %v1427, 0.0
        %v1502 = vmax.f32 %v1432, 0.0
        %v1503 = vmax.f32 %v1437, 0.0
        %v1504 = vmax.f32 %v1442, 0.0
        %v1505 = vmax.f32 %v1447, 0.0
        %v1506 = vmax.f32 %v1452, 0.0
        %v1507 = vmax.f32 %v1457, 0.0
        %v1508 = vmax.f32 %v1462, 0.0
        %v1509 = vmax.f32 %v1467, 0.0
        %v1510 = vmax.f32 %v1472, 0.0
        %v1511 = vmax.f32 %v1477, 0.0
        %v1512 = vmax.f32 %v1482, 0.0
        %v1513 = vmax.f32 %v1487, 0.0
        %v1514 = vmax.f32 %v1492, 0.0
        %v1515 = vmax.f32 %v1497, 0.0
        %v1516 = vld [vmem:[%s10] sm:$0xff]
        %v1517 = vld [vmem:[%s10 + $0x8] sm:$0xff]
        %v1518 = vld [vmem:[%s10 + $0x10] sm:$0xff]
        %v1519 = vld [vmem:[%s10 + $0x18] sm:$0xff]
        %v1520 = vld [vmem:[%s11] sm:$0x1]
        %v1522 = vlaneseq
        %v1523 = vshrl.u32 %v1522, 7
        %v1524 = vsub.s32 0, %v1523
        %v1525 = vrot.slane %v1520, %v1524
        %v1528 = vsel %vm867, %v1500, 0
        %v1531 = vsel %vm867, %v1501, 0
        %v1534 = vsel %vm867, %v1502, 0
        %v1537 = vsel %vm867, %v1503, 0
        %v1540 = vsel %vm867, %v1504, 0
        %v1543 = vsel %vm867, %v1505, 0
        %v1546 = vsel %vm867, %v1506, 0
        %v1549 = vsel %vm867, %v1507, 0
        %v1552 = vsel %vm867, %v1508, 0
        %v1555 = vsel %vm867, %v1509, 0
        %v1558 = vsel %vm867, %v1510, 0
        %v1561 = vsel %vm867, %v1511, 0
        %v1564 = vsel %vm867, %v1512, 0
        %v1567 = vsel %vm867, %v1513, 0
        %v1570 = vsel %vm867, %v1514, 0
        %v1573 = vsel %vm867, %v1515, 0
        %1575 = vmatprep.subr.mxu0 0.0
        %1576 = vmatpush1.msra.mxu0 0.0
        %1577 = vmatprep.subr.mxu0 0.0
        %1578 = vmatpush1.msra.mxu0 0.0
        %1579 = vmatprep.subr.mxu0 0.0
        %1580 = vmatpush1.msra.mxu0 0.0
        %1581 = vmatprep.subr.mxu0 0.0
        %1582 = vmatpush1.msra.mxu0 0.0
        %1583 = vmatprep.subr.mxu0 0.0
        %1584 = vmatpush1.msra.mxu0 0.0
        %1585 = vmatprep.subr.mxu0 0.0
        %1586 = vmatpush1.msra.mxu0 0.0
        %1587 = vmatprep.subr.mxu0 0.0
        %1588 = vmatpush1.msra.mxu0 0.0
        %1589 = vmatprep.subr.mxu0 0.0
        %1590 = vmatpush1.msra.mxu0 0.0
        %1591 = vmatprep.subr.mxu0 0.0
        %1592 = vmatpush1.msra.mxu0 0.0
        %1593 = vmatprep.subr.mxu0 0.0
        %1594 = vmatpush1.msra.mxu0 0.0
        %1595 = vmatprep.subr.mxu0 0.0
        %1596 = vmatpush1.msra.mxu0 0.0
        %1597 = vmatprep.subr.mxu0 0.0
        %1598 = vmatpush1.msra.mxu0 0.0
        %1599 = vmatprep.subr.mxu0 0.0
        %1600 = vmatpush1.msra.mxu0 %v1519
        %1601 = vmatprep.subr.mxu0 0.0
        %1602 = vmatpush1.msra.mxu0 %v1518
        %1603 = vmatprep.subr.mxu0 0.0
        %1604 = vmatpush1.msra.mxu0 %v1517
        %1605 = vmatprep.subr.mxu0 0.0
        %1606 = vmatpush1.msra.mxu0 %v1516
        %1607 = vmatprep.subr.mxu0 0.0
        %1608 = vmatpush2.msra.mxu0 0.0
        %1609 = vmatprep.subr.mxu0 0.0
        %1610 = vmatpush2.msra.mxu0 0.0
        %1611 = vmatprep.subr.mxu0 0.0
        %1612 = vmatpush2.msra.mxu0 0.0
        %1613 = vmatprep.subr.mxu0 0.0
        %1614 = vmatpush2.msra.mxu0 0.0
        %1615 = vmatprep.subr.mxu0 0.0
        %1616 = vmatpush2.msra.mxu0 0.0
        %1617 = vmatprep.subr.mxu0 0.0
        %1618 = vmatpush2.msra.mxu0 0.0
        %1619 = vmatprep.subr.mxu0 0.0
        %1620 = vmatpush2.msra.mxu0 0.0
        %1621 = vmatprep.subr.mxu0 0.0
        %1622 = vmatpush2.msra.mxu0 0.0
        %1623 = vmatprep.subr.mxu0 0.0
        %1624 = vmatpush2.msra.mxu0 0.0
        %1625 = vmatprep.subr.mxu0 0.0
        %1626 = vmatpush2.msra.mxu0 0.0
        %1627 = vmatprep.subr.mxu0 0.0
        %1628 = vmatpush2.msra.mxu0 0.0
        %1629 = vmatprep.subr.mxu0 0.0
        %1630 = vmatpush2.msra.mxu0 0.0
        %1631 = vmatprep.subr.mxu0 0.0
        %1632 = vmatpush2.msra.mxu0 0.0
        %1633 = vmatprep.subr.mxu0 0.0
        %1634 = vmatpush2.msra.mxu0 0.0
        %1635 = vmatprep.subr.mxu0 0.0
        %1636 = vmatpush2.msra.mxu0 0.0
        %1637 = vmatprep.subr.mxu0 0.0
        %1638 = vmatpush2.msra.mxu0 0.0
        %1639 = vmatprep.mubr.f32.mxu0 0.0
        %1640 = vmatmul.mubr.f32.gmra.mxu0 %v1528
        %v1641 = vpop.f32.mrf.mxu0
        %v1642 = vadd.f32 %v1525, %v1641
        %v1643 = vpop.f32.mrf.mxu0
        %1644 = vmatprep.mubr.f32.mxu0 0.0
        %1645 = vmatmul.mubr.f32.gmra.mxu0 %v1531
        %v1646 = vpop.f32.mrf.mxu0
        %v1647 = vadd.f32 %v1525, %v1646
        %v1648 = vpop.f32.mrf.mxu0
        %1649 = vmatprep.mubr.f32.mxu0 0.0
        %1650 = vmatmul.mubr.f32.gmra.mxu0 %v1534
        %v1651 = vpop.f32.mrf.mxu0
        %v1652 = vadd.f32 %v1525, %v1651
        %v1653 = vpop.f32.mrf.mxu0
        %1654 = vmatprep.mubr.f32.mxu0 0.0
        %1655 = vmatmul.mubr.f32.gmra.mxu0 %v1537
        %v1656 = vpop.f32.mrf.mxu0
        %v1657 = vadd.f32 %v1525, %v1656
        %v1658 = vpop.f32.mrf.mxu0
        %1659 = vmatprep.mubr.f32.mxu0 0.0
        %1660 = vmatmul.mubr.f32.gmra.mxu0 %v1540
        %v1661 = vpop.f32.mrf.mxu0
        %v1662 = vadd.f32 %v1525, %v1661
        %v1663 = vpop.f32.mrf.mxu0
        %1664 = vmatprep.mubr.f32.mxu0 0.0
        %1665 = vmatmul.mubr.f32.gmra.mxu0 %v1543
        %v1666 = vpop.f32.mrf.mxu0
        %v1667 = vadd.f32 %v1525, %v1666
        %v1668 = vpop.f32.mrf.mxu0
        %1669 = vmatprep.mubr.f32.mxu0 0.0
        %1670 = vmatmul.mubr.f32.gmra.mxu0 %v1546
        %v1671 = vpop.f32.mrf.mxu0
        %v1672 = vadd.f32 %v1525, %v1671
        %v1673 = vpop.f32.mrf.mxu0
        %1674 = vmatprep.mubr.f32.mxu0 0.0
        %1675 = vmatmul.mubr.f32.gmra.mxu0 %v1549
        %v1676 = vpop.f32.mrf.mxu0
        %v1677 = vadd.f32 %v1525, %v1676
        %v1678 = vpop.f32.mrf.mxu0
        %1679 = vmatprep.mubr.f32.mxu0 0.0
        %1680 = vmatmul.mubr.f32.gmra.mxu0 %v1552
        %v1681 = vpop.f32.mrf.mxu0
        %v1682 = vadd.f32 %v1525, %v1681
        %v1683 = vpop.f32.mrf.mxu0
        %1684 = vmatprep.mubr.f32.mxu0 0.0
        %1685 = vmatmul.mubr.f32.gmra.mxu0 %v1555
        %v1686 = vpop.f32.mrf.mxu0
        %v1687 = vadd.f32 %v1525, %v1686
        %v1688 = vpop.f32.mrf.mxu0
        %1689 = vmatprep.mubr.f32.mxu0 0.0
        %1690 = vmatmul.mubr.f32.gmra.mxu0 %v1558
        %v1691 = vpop.f32.mrf.mxu0
        %v1692 = vadd.f32 %v1525, %v1691
        %v1693 = vpop.f32.mrf.mxu0
        %1694 = vmatprep.mubr.f32.mxu0 0.0
        %1695 = vmatmul.mubr.f32.gmra.mxu0 %v1561
        %v1696 = vpop.f32.mrf.mxu0
        %v1697 = vadd.f32 %v1525, %v1696
        %v1698 = vpop.f32.mrf.mxu0
        %1699 = vmatprep.mubr.f32.mxu0 0.0
        %1700 = vmatmul.mubr.f32.gmra.mxu0 %v1564
        %v1701 = vpop.f32.mrf.mxu0
        %v1702 = vadd.f32 %v1525, %v1701
        %v1703 = vpop.f32.mrf.mxu0
        %1704 = vmatprep.mubr.f32.mxu0 0.0
        %1705 = vmatmul.mubr.f32.gmra.mxu0 %v1567
        %v1706 = vpop.f32.mrf.mxu0
        %v1707 = vadd.f32 %v1525, %v1706
        %v1708 = vpop.f32.mrf.mxu0
        %1709 = vmatprep.mubr.f32.mxu0 0.0
        %1710 = vmatmul.mubr.f32.gmra.mxu0 %v1570
        %v1711 = vpop.f32.mrf.mxu0
        %v1712 = vadd.f32 %v1525, %v1711
        %v1713 = vpop.f32.mrf.mxu0
        %1714 = vmatprep.mubr.f32.mxu0 0.0
        %1715 = vmatmul.mubr.f32.gmra.mxu0 %v1573
        %v1716 = vpop.f32.mrf.mxu0
        %v1717 = vadd.f32 %v1525, %v1716
        %v1718 = vpop.f32.mrf.mxu0
        %1719 = vdwg.mxu0
        %v1720 = vmax.f32 %v1642, 0.0
        %v1721 = vmax.f32 %v1647, 0.0
        %v1722 = vmax.f32 %v1652, 0.0
        %v1723 = vmax.f32 %v1657, 0.0
        %v1724 = vmax.f32 %v1662, 0.0
        %v1725 = vmax.f32 %v1667, 0.0
        %v1726 = vmax.f32 %v1672, 0.0
        %v1727 = vmax.f32 %v1677, 0.0
        %v1728 = vmax.f32 %v1682, 0.0
        %v1729 = vmax.f32 %v1687, 0.0
        %v1730 = vmax.f32 %v1692, 0.0
        %v1731 = vmax.f32 %v1697, 0.0
        %v1732 = vmax.f32 %v1702, 0.0
        %v1733 = vmax.f32 %v1707, 0.0
        %v1734 = vmax.f32 %v1712, 0.0
        %v1735 = vmax.f32 %v1717, 0.0
        %v1736 = vld [vmem:[%s12] sm:$0xff]
        %v1737 = vld [vmem:[%s12 + $0x8] sm:$0xff]
        %v1738 = vld [vmem:[%s13] sm:$0x1]
        %v1740 = vlaneseq
        %v1741 = vshrl.u32 %v1740, 7
        %v1742 = vsub.s32 0, %v1741
        %v1743 = vrot.slane %v1738, %v1742
        %1745 = vmatprep.subr.mxu0 0.0
        %1746 = vmatpush1.msra.mxu0 0.0
        %1747 = vmatprep.subr.mxu0 0.0
        %1748 = vmatpush1.msra.mxu0 0.0
        %1749 = vmatprep.subr.mxu0 0.0
        %1750 = vmatpush1.msra.mxu0 0.0
        %1751 = vmatprep.subr.mxu0 0.0
        %1752 = vmatpush1.msra.mxu0 0.0
        %1753 = vmatprep.subr.mxu0 0.0
        %1754 = vmatpush1.msra.mxu0 0.0
        %1755 = vmatprep.subr.mxu0 0.0
        %1756 = vmatpush1.msra.mxu0 0.0
        %1757 = vmatprep.subr.mxu0 0.0
        %1758 = vmatpush1.msra.mxu0 0.0
        %1759 = vmatprep.subr.mxu0 0.0
        %1760 = vmatpush1.msra.mxu0 0.0
        %1761 = vmatprep.subr.mxu0 0.0
        %1762 = vmatpush1.msra.mxu0 0.0
        %1763 = vmatprep.subr.mxu0 0.0
        %1764 = vmatpush1.msra.mxu0 0.0
        %1765 = vmatprep.subr.mxu0 0.0
        %1766 = vmatpush1.msra.mxu0 0.0
        %1767 = vmatprep.subr.mxu0 0.0
        %1768 = vmatpush1.msra.mxu0 0.0
        %1769 = vmatprep.subr.mxu0 0.0
        %1770 = vmatpush1.msra.mxu0 0.0
        %1771 = vmatprep.subr.mxu0 0.0
        %1772 = vmatpush1.msra.mxu0 0.0
        %1773 = vmatprep.subr.mxu0 0.0
        %1774 = vmatpush1.msra.mxu0 %v1737
        %1775 = vmatprep.subr.mxu0 0.0
        %1776 = vmatpush1.msra.mxu0 %v1736
        %1777 = vmatprep.subr.mxu0 0.0
        %1778 = vmatpush2.msra.mxu0 0.0
        %1779 = vmatprep.subr.mxu0 0.0
        %1780 = vmatpush2.msra.mxu0 0.0
        %1781 = vmatprep.subr.mxu0 0.0
        %1782 = vmatpush2.msra.mxu0 0.0
        %1783 = vmatprep.subr.mxu0 0.0
        %1784 = vmatpush2.msra.mxu0 0.0
        %1785 = vmatprep.subr.mxu0 0.0
        %1786 = vmatpush2.msra.mxu0 0.0
        %1787 = vmatprep.subr.mxu0 0.0
        %1788 = vmatpush2.msra.mxu0 0.0
        %1789 = vmatprep.subr.mxu0 0.0
        %1790 = vmatpush2.msra.mxu0 0.0
        %1791 = vmatprep.subr.mxu0 0.0
        %1792 = vmatpush2.msra.mxu0 0.0
        %1793 = vmatprep.subr.mxu0 0.0
        %1794 = vmatpush2.msra.mxu0 0.0
        %1795 = vmatprep.subr.mxu0 0.0
        %1796 = vmatpush2.msra.mxu0 0.0
        %1797 = vmatprep.subr.mxu0 0.0
        %1798 = vmatpush2.msra.mxu0 0.0
        %1799 = vmatprep.subr.mxu0 0.0
        %1800 = vmatpush2.msra.mxu0 0.0
        %1801 = vmatprep.subr.mxu0 0.0
        %1802 = vmatpush2.msra.mxu0 0.0
        %1803 = vmatprep.subr.mxu0 0.0
        %1804 = vmatpush2.msra.mxu0 0.0
        %1805 = vmatprep.subr.mxu0 0.0
        %1806 = vmatpush2.msra.mxu0 0.0
        %1807 = vmatprep.subr.mxu0 0.0
        %1808 = vmatpush2.msra.mxu0 0.0
        %1809 = vmatprep.mubr.f32.mxu0 0.0
        %1810 = vmatmul.mubr.f32.gmra.mxu0 %v1308
        %v1811 = vpop.f32.mrf.mxu0
        %v1812 = vadd.f32 %v1743, %v1811
        %v1813 = vpop.f32.mrf.mxu0
        %1814 = vmatprep.mubr.f32.mxu0 0.0
        %1815 = vmatmul.mubr.f32.gmra.mxu0 %v1311
        %v1816 = vpop.f32.mrf.mxu0
        %v1817 = vadd.f32 %v1743, %v1816
        %v1818 = vpop.f32.mrf.mxu0
        %1819 = vmatprep.mubr.f32.mxu0 0.0
        %1820 = vmatmul.mubr.f32.gmra.mxu0 %v1314
        %v1821 = vpop.f32.mrf.mxu0
        %v1822 = vadd.f32 %v1743, %v1821
        %v1823 = vpop.f32.mrf.mxu0
        %1824 = vmatprep.mubr.f32.mxu0 0.0
        %1825 = vmatmul.mubr.f32.gmra.mxu0 %v1317
        %v1826 = vpop.f32.mrf.mxu0
        %v1827 = vadd.f32 %v1743, %v1826
        %v1828 = vpop.f32.mrf.mxu0
        %1829 = vmatprep.mubr.f32.mxu0 0.0
        %1830 = vmatmul.mubr.f32.gmra.mxu0 %v1320
        %v1831 = vpop.f32.mrf.mxu0
        %v1832 = vadd.f32 %v1743, %v1831
        %v1833 = vpop.f32.mrf.mxu0
        %1834 = vmatprep.mubr.f32.mxu0 0.0
        %1835 = vmatmul.mubr.f32.gmra.mxu0 %v1323
        %v1836 = vpop.f32.mrf.mxu0
        %v1837 = vadd.f32 %v1743, %v1836
        %v1838 = vpop.f32.mrf.mxu0
        %1839 = vmatprep.mubr.f32.mxu0 0.0
        %1840 = vmatmul.mubr.f32.gmra.mxu0 %v1326
        %v1841 = vpop.f32.mrf.mxu0
        %v1842 = vadd.f32 %v1743, %v1841
        %v1843 = vpop.f32.mrf.mxu0
        %1844 = vmatprep.mubr.f32.mxu0 0.0
        %1845 = vmatmul.mubr.f32.gmra.mxu0 %v1329
        %v1846 = vpop.f32.mrf.mxu0
        %v1847 = vadd.f32 %v1743, %v1846
        %v1848 = vpop.f32.mrf.mxu0
        %1849 = vmatprep.mubr.f32.mxu0 0.0
        %1850 = vmatmul.mubr.f32.gmra.mxu0 %v1332
        %v1851 = vpop.f32.mrf.mxu0
        %v1852 = vadd.f32 %v1743, %v1851
        %v1853 = vpop.f32.mrf.mxu0
        %1854 = vmatprep.mubr.f32.mxu0 0.0
        %1855 = vmatmul.mubr.f32.gmra.mxu0 %v1335
        %v1856 = vpop.f32.mrf.mxu0
        %v1857 = vadd.f32 %v1743, %v1856
        %v1858 = vpop.f32.mrf.mxu0
        %1859 = vmatprep.mubr.f32.mxu0 0.0
        %1860 = vmatmul.mubr.f32.gmra.mxu0 %v1338
        %v1861 = vpop.f32.mrf.mxu0
        %v1862 = vadd.f32 %v1743, %v1861
        %v1863 = vpop.f32.mrf.mxu0
        %1864 = vmatprep.mubr.f32.mxu0 0.0
        %1865 = vmatmul.mubr.f32.gmra.mxu0 %v1341
        %v1866 = vpop.f32.mrf.mxu0
        %v1867 = vadd.f32 %v1743, %v1866
        %v1868 = vpop.f32.mrf.mxu0
        %1869 = vmatprep.mubr.f32.mxu0 0.0
        %1870 = vmatmul.mubr.f32.gmra.mxu0 %v1344
        %v1871 = vpop.f32.mrf.mxu0
        %v1872 = vadd.f32 %v1743, %v1871
        %v1873 = vpop.f32.mrf.mxu0
        %1874 = vmatprep.mubr.f32.mxu0 0.0
        %1875 = vmatmul.mubr.f32.gmra.mxu0 %v1347
        %v1876 = vpop.f32.mrf.mxu0
        %v1877 = vadd.f32 %v1743, %v1876
        %v1878 = vpop.f32.mrf.mxu0
        %1879 = vmatprep.mubr.f32.mxu0 0.0
        %1880 = vmatmul.mubr.f32.gmra.mxu0 %v1350
        %v1881 = vpop.f32.mrf.mxu0
        %v1882 = vadd.f32 %v1743, %v1881
        %v1883 = vpop.f32.mrf.mxu0
        %1884 = vmatprep.mubr.f32.mxu0 0.0
        %1885 = vmatmul.mubr.f32.gmra.mxu0 %v1353
        %v1886 = vpop.f32.mrf.mxu0
        %v1887 = vadd.f32 %v1743, %v1886
        %v1888 = vpop.f32.mrf.mxu0
        %1889 = vdwg.mxu0
        %v1890 = vmax.f32 %v1812, 0.0
        %v1891 = vmax.f32 %v1817, 0.0
        %v1892 = vmax.f32 %v1822, 0.0
        %v1893 = vmax.f32 %v1827, 0.0
        %v1894 = vmax.f32 %v1832, 0.0
        %v1895 = vmax.f32 %v1837, 0.0
        %v1896 = vmax.f32 %v1842, 0.0
        %v1897 = vmax.f32 %v1847, 0.0
        %v1898 = vmax.f32 %v1852, 0.0
        %v1899 = vmax.f32 %v1857, 0.0
        %v1900 = vmax.f32 %v1862, 0.0
        %v1901 = vmax.f32 %v1867, 0.0
        %v1902 = vmax.f32 %v1872, 0.0
        %v1903 = vmax.f32 %v1877, 0.0
        %v1904 = vmax.f32 %v1882, 0.0
        %v1905 = vmax.f32 %v1887, 0.0
        %v1906 = vld [vmem:[%s14] sm:$0xff]
        %v1907 = vld [vmem:[%s15] sm:$0x1]
        %v1909 = vlaneseq
        %v1910 = vshrl.u32 %v1909, 7
        %v1911 = vsub.s32 0, %v1910
        %v1912 = vrot.slane %v1907, %v1911
        %vm1914 = vcmask 64512
        %v1916 = vsel %vm1914, %v1890, 0
        %v1919 = vsel %vm1914, %v1891, 0
        %v1922 = vsel %vm1914, %v1892, 0
        %v1925 = vsel %vm1914, %v1893, 0
        %v1928 = vsel %vm1914, %v1894, 0
        %v1931 = vsel %vm1914, %v1895, 0
        %v1934 = vsel %vm1914, %v1896, 0
        %v1937 = vsel %vm1914, %v1897, 0
        %v1940 = vsel %vm1914, %v1898, 0
        %v1943 = vsel %vm1914, %v1899, 0
        %v1946 = vsel %vm1914, %v1900, 0
        %v1949 = vsel %vm1914, %v1901, 0
        %v1952 = vsel %vm1914, %v1902, 0
        %v1955 = vsel %vm1914, %v1903, 0
        %v1958 = vsel %vm1914, %v1904, 0
        %v1961 = vsel %vm1914, %v1905, 0
        %1963 = vmatprep.subr.mxu0 0.0
        %1964 = vmatpush1.msra.mxu0 0.0
        %1965 = vmatprep.subr.mxu0 0.0
        %1966 = vmatpush1.msra.mxu0 0.0
        %1967 = vmatprep.subr.mxu0 0.0
        %1968 = vmatpush1.msra.mxu0 0.0
        %1969 = vmatprep.subr.mxu0 0.0
        %1970 = vmatpush1.msra.mxu0 0.0
        %1971 = vmatprep.subr.mxu0 0.0
        %1972 = vmatpush1.msra.mxu0 0.0
        %1973 = vmatprep.subr.mxu0 0.0
        %1974 = vmatpush1.msra.mxu0 0.0
        %1975 = vmatprep.subr.mxu0 0.0
        %1976 = vmatpush1.msra.mxu0 0.0
        %1977 = vmatprep.subr.mxu0 0.0
        %1978 = vmatpush1.msra.mxu0 0.0
        %1979 = vmatprep.subr.mxu0 0.0
        %1980 = vmatpush1.msra.mxu0 0.0
        %1981 = vmatprep.subr.mxu0 0.0
        %1982 = vmatpush1.msra.mxu0 0.0
        %1983 = vmatprep.subr.mxu0 0.0
        %1984 = vmatpush1.msra.mxu0 0.0
        %1985 = vmatprep.subr.mxu0 0.0
        %1986 = vmatpush1.msra.mxu0 0.0
        %1987 = vmatprep.subr.mxu0 0.0
        %1988 = vmatpush1.msra.mxu0 0.0
        %1989 = vmatprep.subr.mxu0 0.0
        %1990 = vmatpush1.msra.mxu0 0.0
        %1991 = vmatprep.subr.mxu0 0.0
        %1992 = vmatpush1.msra.mxu0 0.0
        %1993 = vmatprep.subr.mxu0 0.0
        %1994 = vmatpush1.msra.mxu0 %v1906
        %1995 = vmatprep.subr.mxu0 0.0
        %1996 = vmatpush2.msra.mxu0 0.0
        %1997 = vmatprep.subr.mxu0 0.0
        %1998 = vmatpush2.msra.mxu0 0.0
        %1999 = vmatprep.subr.mxu0 0.0
        %2000 = vmatpush2.msra.mxu0 0.0
        %2001 = vmatprep.subr.mxu0 0.0
        %2002 = vmatpush2.msra.mxu0 0.0
        %2003 = vmatprep.subr.mxu0 0.0
        %2004 = vmatpush2.msra.mxu0 0.0
        %2005 = vmatprep.subr.mxu0 0.0
        %2006 = vmatpush2.msra.mxu0 0.0
        %2007 = vmatprep.subr.mxu0 0.0
        %2008 = vmatpush2.msra.mxu0 0.0
        %2009 = vmatprep.subr.mxu0 0.0
        %2010 = vmatpush2.msra.mxu0 0.0
        %2011 = vmatprep.subr.mxu0 0.0
        %2012 = vmatpush2.msra.mxu0 0.0
        %2013 = vmatprep.subr.mxu0 0.0
        %2014 = vmatpush2.msra.mxu0 0.0
        %2015 = vmatprep.subr.mxu0 0.0
        %2016 = vmatpush2.msra.mxu0 0.0
        %2017 = vmatprep.subr.mxu0 0.0
        %2018 = vmatpush2.msra.mxu0 0.0
        %2019 = vmatprep.subr.mxu0 0.0
        %2020 = vmatpush2.msra.mxu0 0.0
        %2021 = vmatprep.subr.mxu0 0.0
        %2022 = vmatpush2.msra.mxu0 0.0
        %2023 = vmatprep.subr.mxu0 0.0
        %2024 = vmatpush2.msra.mxu0 0.0
        %2025 = vmatprep.subr.mxu0 0.0
        %2026 = vmatpush2.msra.mxu0 0.0
        %2027 = vmatprep.mubr.f32.mxu0 0.0
        %2028 = vmatmul.mubr.f32.gmra.mxu0 %v1916
        %v2029 = vpop.f32.mrf.mxu0
        %v2030 = vadd.f32 %v1912, %v2029
        %v2031 = vpop.f32.mrf.mxu0
        %2032 = vmatprep.mubr.f32.mxu0 0.0
        %2033 = vmatmul.mubr.f32.gmra.mxu0 %v1919
        %v2034 = vpop.f32.mrf.mxu0
        %v2035 = vadd.f32 %v1912, %v2034
        %v2036 = vpop.f32.mrf.mxu0
        %2037 = vmatprep.mubr.f32.mxu0 0.0
        %2038 = vmatmul.mubr.f32.gmra.mxu0 %v1922
        %v2039 = vpop.f32.mrf.mxu0
        %v2040 = vadd.f32 %v1912, %v2039
        %v2041 = vpop.f32.mrf.mxu0
        %2042 = vmatprep.mubr.f32.mxu0 0.0
        %2043 = vmatmul.mubr.f32.gmra.mxu0 %v1925
        %v2044 = vpop.f32.mrf.mxu0
        %v2045 = vadd.f32 %v1912, %v2044
        %v2046 = vpop.f32.mrf.mxu0
        %2047 = vmatprep.mubr.f32.mxu0 0.0
        %2048 = vmatmul.mubr.f32.gmra.mxu0 %v1928
        %v2049 = vpop.f32.mrf.mxu0
        %v2050 = vadd.f32 %v1912, %v2049
        %v2051 = vpop.f32.mrf.mxu0
        %2052 = vmatprep.mubr.f32.mxu0 0.0
        %2053 = vmatmul.mubr.f32.gmra.mxu0 %v1931
        %v2054 = vpop.f32.mrf.mxu0
        %v2055 = vadd.f32 %v1912, %v2054
        %v2056 = vpop.f32.mrf.mxu0
        %2057 = vmatprep.mubr.f32.mxu0 0.0
        %2058 = vmatmul.mubr.f32.gmra.mxu0 %v1934
        %v2059 = vpop.f32.mrf.mxu0
        %v2060 = vadd.f32 %v1912, %v2059
        %v2061 = vpop.f32.mrf.mxu0
        %2062 = vmatprep.mubr.f32.mxu0 0.0
        %2063 = vmatmul.mubr.f32.gmra.mxu0 %v1937
        %v2064 = vpop.f32.mrf.mxu0
        %v2065 = vadd.f32 %v1912, %v2064
        %v2066 = vpop.f32.mrf.mxu0
        %2067 = vmatprep.mubr.f32.mxu0 0.0
        %2068 = vmatmul.mubr.f32.gmra.mxu0 %v1940
        %v2069 = vpop.f32.mrf.mxu0
        %v2070 = vadd.f32 %v1912, %v2069
        %v2071 = vpop.f32.mrf.mxu0
        %2072 = vmatprep.mubr.f32.mxu0 0.0
        %2073 = vmatmul.mubr.f32.gmra.mxu0 %v1943
        %v2074 = vpop.f32.mrf.mxu0
        %v2075 = vadd.f32 %v1912, %v2074
        %v2076 = vpop.f32.mrf.mxu0
        %2077 = vmatprep.mubr.f32.mxu0 0.0
        %2078 = vmatmul.mubr.f32.gmra.mxu0 %v1946
        %v2079 = vpop.f32.mrf.mxu0
        %v2080 = vadd.f32 %v1912, %v2079
        %v2081 = vpop.f32.mrf.mxu0
        %2082 = vmatprep.mubr.f32.mxu0 0.0
        %2083 = vmatmul.mubr.f32.gmra.mxu0 %v1949
        %v2084 = vpop.f32.mrf.mxu0
        %v2085 = vadd.f32 %v1912, %v2084
        %v2086 = vpop.f32.mrf.mxu0
        %2087 = vmatprep.mubr.f32.mxu0 0.0
        %2088 = vmatmul.mubr.f32.gmra.mxu0 %v1952
        %v2089 = vpop.f32.mrf.mxu0
        %v2090 = vadd.f32 %v1912, %v2089
        %v2091 = vpop.f32.mrf.mxu0
        %2092 = vmatprep.mubr.f32.mxu0 0.0
        %2093 = vmatmul.mubr.f32.gmra.mxu0 %v1955
        %v2094 = vpop.f32.mrf.mxu0
        %v2095 = vadd.f32 %v1912, %v2094
        %v2096 = vpop.f32.mrf.mxu0
        %2097 = vmatprep.mubr.f32.mxu0 0.0
        %2098 = vmatmul.mubr.f32.gmra.mxu0 %v1958
        %v2099 = vpop.f32.mrf.mxu0
        %v2100 = vadd.f32 %v1912, %v2099
        %v2101 = vpop.f32.mrf.mxu0
        %2102 = vmatprep.mubr.f32.mxu0 0.0
        %2103 = vmatmul.mubr.f32.gmra.mxu0 %v1961
        %v2104 = vpop.f32.mrf.mxu0
        %v2105 = vadd.f32 %v1912, %v2104
        %v2106 = vpop.f32.mrf.mxu0
        %2107 = vdwg.mxu0
        %v2108 = vmax.f32 %v2030, 0.0
        %v2109 = vmax.f32 %v2035, 0.0
        %v2110 = vmax.f32 %v2040, 0.0
        %v2111 = vmax.f32 %v2045, 0.0
        %v2112 = vmax.f32 %v2050, 0.0
        %v2113 = vmax.f32 %v2055, 0.0
        %v2114 = vmax.f32 %v2060, 0.0
        %v2115 = vmax.f32 %v2065, 0.0
        %v2116 = vmax.f32 %v2070, 0.0
        %v2117 = vmax.f32 %v2075, 0.0
        %v2118 = vmax.f32 %v2080, 0.0
        %v2119 = vmax.f32 %v2085, 0.0
        %v2120 = vmax.f32 %v2090, 0.0
        %v2121 = vmax.f32 %v2095, 0.0
        %v2122 = vmax.f32 %v2100, 0.0
        %v2123 = vmax.f32 %v2105, 0.0
        %v2124 = vld [vmem:[%s16] sm:$0xf]
        %v2125 = vld [vmem:[%s17] sm:$0x1]
        %v2127 = vlaneseq
        %v2128 = vshrl.u32 %v2127, 7
        %v2129 = vsub.s32 0, %v2128
        %v2130 = vrot.slane %v2125, %v2129
        %vm2132 = vcmask 31744
        %v2134 = vsel %vm2132, %v2108, 0
        %v2137 = vsel %vm2132, %v2109, 0
        %v2140 = vsel %vm2132, %v2110, 0
        %v2143 = vsel %vm2132, %v2111, 0
        %v2146 = vsel %vm2132, %v2112, 0
        %v2149 = vsel %vm2132, %v2113, 0
        %v2152 = vsel %vm2132, %v2114, 0
        %v2155 = vsel %vm2132, %v2115, 0
        %v2158 = vsel %vm2132, %v2116, 0
        %v2161 = vsel %vm2132, %v2117, 0
        %v2164 = vsel %vm2132, %v2118, 0
        %v2167 = vsel %vm2132, %v2119, 0
        %v2170 = vsel %vm2132, %v2120, 0
        %v2173 = vsel %vm2132, %v2121, 0
        %v2176 = vsel %vm2132, %v2122, 0
        %v2179 = vsel %vm2132, %v2123, 0
        %vm2181 = vcmask 1043456
        %v2183 = vsel %vm2181, %v2124, 0
        %2185 = vmatprep.subr.mxu0 0.0
        %2186 = vmatpush1.msra.mxu0 0.0
        %2187 = vmatprep.subr.mxu0 0.0
        %2188 = vmatpush1.msra.mxu0 0.0
        %2189 = vmatprep.subr.mxu0 0.0
        %2190 = vmatpush1.msra.mxu0 0.0
        %2191 = vmatprep.subr.mxu0 0.0
        %2192 = vmatpush1.msra.mxu0 0.0
        %2193 = vmatprep.subr.mxu0 0.0
        %2194 = vmatpush1.msra.mxu0 0.0
        %2195 = vmatprep.subr.mxu0 0.0
        %2196 = vmatpush1.msra.mxu0 0.0
        %2197 = vmatprep.subr.mxu0 0.0
        %2198 = vmatpush1.msra.mxu0 0.0
        %2199 = vmatprep.subr.mxu0 0.0
        %2200 = vmatpush1.msra.mxu0 0.0
        %2201 = vmatprep.subr.mxu0 0.0
        %2202 = vmatpush1.msra.mxu0 0.0
        %2203 = vmatprep.subr.mxu0 0.0
        %2204 = vmatpush1.msra.mxu0 0.0
        %2205 = vmatprep.subr.mxu0 0.0
        %2206 = vmatpush1.msra.mxu0 0.0
        %2207 = vmatprep.subr.mxu0 0.0
        %2208 = vmatpush1.msra.mxu0 0.0
        %2209 = vmatprep.subr.mxu0 0.0
        %2210 = vmatpush1.msra.mxu0 0.0
        %2211 = vmatprep.subr.mxu0 0.0
        %2212 = vmatpush1.msra.mxu0 0.0
        %2213 = vmatprep.subr.mxu0 0.0
        %2214 = vmatpush1.msra.mxu0 0.0
        %2215 = vmatprep.subr.mxu0 0.0
        %2216 = vmatpush1.msra.mxu0 %v2183
        %2217 = vmatprep.subr.mxu0 0.0
        %2218 = vmatpush2.msra.mxu0 0.0
        %2219 = vmatprep.subr.mxu0 0.0
        %2220 = vmatpush2.msra.mxu0 0.0
        %2221 = vmatprep.subr.mxu0 0.0
        %2222 = vmatpush2.msra.mxu0 0.0
        %2223 = vmatprep.subr.mxu0 0.0
        %2224 = vmatpush2.msra.mxu0 0.0
        %2225 = vmatprep.subr.mxu0 0.0
        %2226 = vmatpush2.msra.mxu0 0.0
        %2227 = vmatprep.subr.mxu0 0.0
        %2228 = vmatpush2.msra.mxu0 0.0
        %2229 = vmatprep.subr.mxu0 0.0
        %2230 = vmatpush2.msra.mxu0 0.0
        %2231 = vmatprep.subr.mxu0 0.0
        %2232 = vmatpush2.msra.mxu0 0.0
        %2233 = vmatprep.subr.mxu0 0.0
        %2234 = vmatpush2.msra.mxu0 0.0
        %2235 = vmatprep.subr.mxu0 0.0
        %2236 = vmatpush2.msra.mxu0 0.0
        %2237 = vmatprep.subr.mxu0 0.0
        %2238 = vmatpush2.msra.mxu0 0.0
        %2239 = vmatprep.subr.mxu0 0.0
        %2240 = vmatpush2.msra.mxu0 0.0
        %2241 = vmatprep.subr.mxu0 0.0
        %2242 = vmatpush2.msra.mxu0 0.0
        %2243 = vmatprep.subr.mxu0 0.0
        %2244 = vmatpush2.msra.mxu0 0.0
        %2245 = vmatprep.subr.mxu0 0.0
        %2246 = vmatpush2.msra.mxu0 0.0
        %2247 = vmatprep.subr.mxu0 0.0
        %2248 = vmatpush2.msra.mxu0 0.0
        %2249 = vmatprep.mubr.f32.mxu0 0.0
        %2250 = vmatmul.mubr.f32.gmra.mxu0 %v2134
        %v2251 = vpop.f32.mrf.mxu0
        %v2252 = vadd.f32 %v2130, %v2251
        %v2253 = vpop.f32.mrf.mxu0
        %2254 = vmatprep.mubr.f32.mxu0 0.0
        %2255 = vmatmul.mubr.f32.gmra.mxu0 %v2137
        %v2256 = vpop.f32.mrf.mxu0
        %v2257 = vadd.f32 %v2130, %v2256
        %v2258 = vpop.f32.mrf.mxu0
        %2259 = vmatprep.mubr.f32.mxu0 0.0
        %2260 = vmatmul.mubr.f32.gmra.mxu0 %v2140
        %v2261 = vpop.f32.mrf.mxu0
        %v2262 = vadd.f32 %v2130, %v2261
        %v2263 = vpop.f32.mrf.mxu0
        %2264 = vmatprep.mubr.f32.mxu0 0.0
        %2265 = vmatmul.mubr.f32.gmra.mxu0 %v2143
        %v2266 = vpop.f32.mrf.mxu0
        %v2267 = vadd.f32 %v2130, %v2266
        %v2268 = vpop.f32.mrf.mxu0
        %2269 = vmatprep.mubr.f32.mxu0 0.0
        %2270 = vmatmul.mubr.f32.gmra.mxu0 %v2146
        %v2271 = vpop.f32.mrf.mxu0
        %v2272 = vadd.f32 %v2130, %v2271
        %v2273 = vpop.f32.mrf.mxu0
        %2274 = vmatprep.mubr.f32.mxu0 0.0
        %2275 = vmatmul.mubr.f32.gmra.mxu0 %v2149
        %v2276 = vpop.f32.mrf.mxu0
        %v2277 = vadd.f32 %v2130, %v2276
        %v2278 = vpop.f32.mrf.mxu0
        %2279 = vmatprep.mubr.f32.mxu0 0.0
        %2280 = vmatmul.mubr.f32.gmra.mxu0 %v2152
        %v2281 = vpop.f32.mrf.mxu0
        %v2282 = vadd.f32 %v2130, %v2281
        %v2283 = vpop.f32.mrf.mxu0
        %2284 = vmatprep.mubr.f32.mxu0 0.0
        %2285 = vmatmul.mubr.f32.gmra.mxu0 %v2155
        %v2286 = vpop.f32.mrf.mxu0
        %v2287 = vadd.f32 %v2130, %v2286
        %v2288 = vpop.f32.mrf.mxu0
        %2289 = vmatprep.mubr.f32.mxu0 0.0
        %2290 = vmatmul.mubr.f32.gmra.mxu0 %v2158
        %v2291 = vpop.f32.mrf.mxu0
        %v2292 = vadd.f32 %v2130, %v2291
        %v2293 = vpop.f32.mrf.mxu0
        %2294 = vmatprep.mubr.f32.mxu0 0.0
        %2295 = vmatmul.mubr.f32.gmra.mxu0 %v2161
        %v2296 = vpop.f32.mrf.mxu0
        %v2297 = vadd.f32 %v2130, %v2296
        %v2298 = vpop.f32.mrf.mxu0
        %2299 = vmatprep.mubr.f32.mxu0 0.0
        %2300 = vmatmul.mubr.f32.gmra.mxu0 %v2164
        %v2301 = vpop.f32.mrf.mxu0
        %v2302 = vadd.f32 %v2130, %v2301
        %v2303 = vpop.f32.mrf.mxu0
        %2304 = vmatprep.mubr.f32.mxu0 0.0
        %2305 = vmatmul.mubr.f32.gmra.mxu0 %v2167
        %v2306 = vpop.f32.mrf.mxu0
        %v2307 = vadd.f32 %v2130, %v2306
        %v2308 = vpop.f32.mrf.mxu0
        %2309 = vmatprep.mubr.f32.mxu0 0.0
        %2310 = vmatmul.mubr.f32.gmra.mxu0 %v2170
        %v2311 = vpop.f32.mrf.mxu0
        %v2312 = vadd.f32 %v2130, %v2311
        %v2313 = vpop.f32.mrf.mxu0
        %2314 = vmatprep.mubr.f32.mxu0 0.0
        %2315 = vmatmul.mubr.f32.gmra.mxu0 %v2173
        %v2316 = vpop.f32.mrf.mxu0
        %v2317 = vadd.f32 %v2130, %v2316
        %v2318 = vpop.f32.mrf.mxu0
        %2319 = vmatprep.mubr.f32.mxu0 0.0
        %2320 = vmatmul.mubr.f32.gmra.mxu0 %v2176
        %v2321 = vpop.f32.mrf.mxu0
        %v2322 = vadd.f32 %v2130, %v2321
        %v2323 = vpop.f32.mrf.mxu0
        %2324 = vmatprep.mubr.f32.mxu0 0.0
        %2325 = vmatmul.mubr.f32.gmra.mxu0 %v2179
        %v2326 = vpop.f32.mrf.mxu0
        %v2327 = vadd.f32 %v2130, %v2326
        %v2328 = vpop.f32.mrf.mxu0
        %2329 = vdwg.mxu0
        %v2330 = vsel %vm2132, %v2252, -inf
        %2331 = vmax.xlane.f32.xlu0 %v2330
        %v2332 = vpop.xlane.xlu0 %2331
        %v2333 = vsel %vm2132, %v2257, -inf
        %2334 = vmax.xlane.f32.xlu0 %v2333
        %v2335 = vpop.xlane.xlu0 %2334
        %v2336 = vsel %vm2132, %v2262, -inf
        %2337 = vmax.xlane.f32.xlu0 %v2336
        %v2338 = vpop.xlane.xlu0 %2337
        %v2339 = vsel %vm2132, %v2267, -inf
        %2340 = vmax.xlane.f32.xlu0 %v2339
        %v2341 = vpop.xlane.xlu0 %2340
        %v2342 = vsel %vm2132, %v2272, -inf
        %2343 = vmax.xlane.f32.xlu0 %v2342
        %v2344 = vpop.xlane.xlu0 %2343
        %v2345 = vsel %vm2132, %v2277, -inf
        %2346 = vmax.xlane.f32.xlu0 %v2345
        %v2347 = vpop.xlane.xlu0 %2346
        %v2348 = vsel %vm2132, %v2282, -inf
        %2349 = vmax.xlane.f32.xlu0 %v2348
        %v2350 = vpop.xlane.xlu0 %2349
        %v2351 = vsel %vm2132, %v2287, -inf
        %2352 = vmax.xlane.f32.xlu0 %v2351
        %v2353 = vpop.xlane.xlu0 %2352
        %v2354 = vsel %vm2132, %v2292, -inf
        %2355 = vmax.xlane.f32.xlu0 %v2354
        %v2356 = vpop.xlane.xlu0 %2355
        %v2357 = vsel %vm2132, %v2297, -inf
        %2358 = vmax.xlane.f32.xlu0 %v2357
        %v2359 = vpop.xlane.xlu0 %2358
        %v2360 = vsel %vm2132, %v2302, -inf
        %2361 = vmax.xlane.f32.xlu0 %v2360
        %v2362 = vpop.xlane.xlu0 %2361
        %v2363 = vsel %vm2132, %v2307, -inf
        %2364 = vmax.xlane.f32.xlu0 %v2363
        %v2365 = vpop.xlane.xlu0 %2364
        %v2366 = vsel %vm2132, %v2312, -inf
        %2367 = vmax.xlane.f32.xlu0 %v2366
        %v2368 = vpop.xlane.xlu0 %2367
        %v2369 = vsel %vm2132, %v2317, -inf
        %2370 = vmax.xlane.f32.xlu0 %v2369
        %v2371 = vpop.xlane.xlu0 %2370
        %v2372 = vsel %vm2132, %v2322, -inf
        %2373 = vmax.xlane.f32.xlu0 %v2372
        %v2374 = vpop.xlane.xlu0 %2373
        %v2375 = vsel %vm2132, %v2327, -inf
        %2376 = vmax.xlane.f32.xlu0 %v2375
        %v2377 = vpop.xlane.xlu0 %2376
        %v2378 = vsub.f32 %v2252, %v2332
        %v2379 = vsub.f32 %v2257, %v2335
        %v2380 = vsub.f32 %v2262, %v2338
        %v2381 = vsub.f32 %v2267, %v2341
        %v2382 = vsub.f32 %v2272, %v2344
        %v2383 = vsub.f32 %v2277, %v2347
        %v2384 = vsub.f32 %v2282, %v2350
        %v2385 = vsub.f32 %v2287, %v2353
        %v2386 = vsub.f32 %v2292, %v2356
        %v2387 = vsub.f32 %v2297, %v2359
        %v2388 = vsub.f32 %v2302, %v2362
        %v2389 = vsub.f32 %v2307, %v2365
        %v2390 = vsub.f32 %v2312, %v2368
        %v2391 = vsub.f32 %v2317, %v2371
        %v2392 = vsub.f32 %v2322, %v2374
        %v2393 = vsub.f32 %v2327, %v2377
        %v2394 = vmul.f32 %v2378, 1.442695
        %v2395 = vpow.pop %v2394
        %v2396 = vmul.f32 %v2379, 1.442695
        %v2397 = vpow.pop %v2396
        %v2398 = vmul.f32 %v2380, 1.442695
        %v2399 = vpow.pop %v2398
        %v2400 = vmul.f32 %v2381, 1.442695
        %v2401 = vpow.pop %v2400
        %v2402 = vmul.f32 %v2382, 1.442695
        %v2403 = vpow.pop %v2402
        %v2404 = vmul.f32 %v2383, 1.442695
        %v2405 = vpow.pop %v2404
        %v2406 = vmul.f32 %v2384, 1.442695
        %v2407 = vpow.pop %v2406
        %v2408 = vmul.f32 %v2385, 1.442695
        %v2409 = vpow.pop %v2408
        %v2410 = vmul.f32 %v2386, 1.442695
        %v2411 = vpow.pop %v2410
        %v2412 = vmul.f32 %v2387, 1.442695
        %v2413 = vpow.pop %v2412
        %v2414 = vmul.f32 %v2388, 1.442695
        %v2415 = vpow.pop %v2414
        %v2416 = vmul.f32 %v2389, 1.442695
        %v2417 = vpow.pop %v2416
        %v2418 = vmul.f32 %v2390, 1.442695
        %v2419 = vpow.pop %v2418
        %v2420 = vmul.f32 %v2391, 1.442695
        %v2421 = vpow.pop %v2420
        %v2422 = vmul.f32 %v2392, 1.442695
        %v2423 = vpow.pop %v2422
        %v2424 = vmul.f32 %v2393, 1.442695
        %v2425 = vpow.pop %v2424
        %v2426 = vsel %vm2132, %v2395, 0.0
        %2427 = vadd.xlane.f32.xlu0 %v2426
        %v2428 = vpop.xlane.xlu0 %2427
        %v2429 = vsel %vm2132, %v2397, 0.0
        %2430 = vadd.xlane.f32.xlu0 %v2429
        %v2431 = vpop.xlane.xlu0 %2430
        %v2432 = vsel %vm2132, %v2399, 0.0
        %2433 = vadd.xlane.f32.xlu0 %v2432
        %v2434 = vpop.xlane.xlu0 %2433
        %v2435 = vsel %vm2132, %v2401, 0.0
        %2436 = vadd.xlane.f32.xlu0 %v2435
        %v2437 = vpop.xlane.xlu0 %2436
        %v2438 = vsel %vm2132, %v2403, 0.0
        %2439 = vadd.xlane.f32.xlu0 %v2438
        %v2440 = vpop.xlane.xlu0 %2439
        %v2441 = vsel %vm2132, %v2405, 0.0
        %2442 = vadd.xlane.f32.xlu0 %v2441
        %v2443 = vpop.xlane.xlu0 %2442
        %v2444 = vsel %vm2132, %v2407, 0.0
        %2445 = vadd.xlane.f32.xlu0 %v2444
        %v2446 = vpop.xlane.xlu0 %2445
        %v2447 = vsel %vm2132, %v2409, 0.0
        %2448 = vadd.xlane.f32.xlu0 %v2447
        %v2449 = vpop.xlane.xlu0 %2448
        %v2450 = vsel %vm2132, %v2411, 0.0
        %2451 = vadd.xlane.f32.xlu0 %v2450
        %v2452 = vpop.xlane.xlu0 %2451
        %v2453 = vsel %vm2132, %v2413, 0.0
        %2454 = vadd.xlane.f32.xlu0 %v2453
        %v2455 = vpop.xlane.xlu0 %2454
        %v2456 = vsel %vm2132, %v2415, 0.0
        %2457 = vadd.xlane.f32.xlu0 %v2456
        %v2458 = vpop.xlane.xlu0 %2457
        %v2459 = vsel %vm2132, %v2417, 0.0
        %2460 = vadd.xlane.f32.xlu0 %v2459
        %v2461 = vpop.xlane.xlu0 %2460
        %v2462 = vsel %vm2132, %v2419, 0.0
        %2463 = vadd.xlane.f32.xlu0 %v2462
        %v2464 = vpop.xlane.xlu0 %2463
        %v2465 = vsel %vm2132, %v2421, 0.0
        %2466 = vadd.xlane.f32.xlu0 %v2465
        %v2467 = vpop.xlane.xlu0 %2466
        %v2468 = vsel %vm2132, %v2423, 0.0
        %2469 = vadd.xlane.f32.xlu0 %v2468
        %v2470 = vpop.xlane.xlu0 %2469
        %v2471 = vsel %vm2132, %v2425, 0.0
        %2472 = vadd.xlane.f32.xlu0 %v2471
        %v2473 = vpop.xlane.xlu0 %2472
        %v2474 = vrcp.pop %v2428
        %v2475 = vrcp.pop %v2431
        %v2476 = vrcp.pop %v2434
        %v2477 = vrcp.pop %v2437
        %v2478 = vrcp.pop %v2440
        %v2479 = vrcp.pop %v2443
        %v2480 = vrcp.pop %v2446
        %v2481 = vrcp.pop %v2449
        %v2482 = vrcp.pop %v2452
        %v2483 = vrcp.pop %v2455
        %v2484 = vrcp.pop %v2458
        %v2485 = vrcp.pop %v2461
        %v2486 = vrcp.pop %v2464
        %v2487 = vrcp.pop %v2467
        %v2488 = vrcp.pop %v2470
        %v2489 = vrcp.pop %v2473
        %v2490 = vmul.f32 %v2395, %v2474
        %v2491 = vmul.f32 %v2397, %v2475
        %v2492 = vmul.f32 %v2399, %v2476
        %v2493 = vmul.f32 %v2401, %v2477
        %v2494 = vmul.f32 %v2403, %v2478
        %v2495 = vmul.f32 %v2405, %v2479
        %v2496 = vmul.f32 %v2407, %v2480
        %v2497 = vmul.f32 %v2409, %v2481
        %v2498 = vmul.f32 %v2411, %v2482
        %v2499 = vmul.f32 %v2413, %v2483
        %v2500 = vmul.f32 %v2415, %v2484
        %v2501 = vmul.f32 %v2417, %v2485
        %v2502 = vmul.f32 %v2419, %v2486
        %v2503 = vmul.f32 %v2421, %v2487
        %v2504 = vmul.f32 %v2423, %v2488
        %v2505 = vmul.f32 %v2425, %v2489
        %vm2506 = vcmp.ne.f32.partialorder %v2490, %v2490
        %vm2507 = vcmp.ne.f32.partialorder %v2491, %v2491
        %vm2508 = vcmp.ne.f32.partialorder %v2492, %v2492
        %vm2509 = vcmp.ne.f32.partialorder %v2493, %v2493
        %vm2510 = vcmp.ne.f32.partialorder %v2494, %v2494
        %vm2511 = vcmp.ne.f32.partialorder %v2495, %v2495
        %vm2512 = vcmp.ne.f32.partialorder %v2496, %v2496
        %vm2513 = vcmp.ne.f32.partialorder %v2497, %v2497
        %vm2514 = vcmp.ne.f32.partialorder %v2498, %v2498
        %vm2515 = vcmp.ne.f32.partialorder %v2499, %v2499
        %vm2516 = vcmp.ne.f32.partialorder %v2500, %v2500
        %vm2517 = vcmp.ne.f32.partialorder %v2501, %v2501
        %vm2518 = vcmp.ne.f32.partialorder %v2502, %v2502
        %vm2519 = vcmp.ne.f32.partialorder %v2503, %v2503
        %vm2520 = vcmp.ne.f32.partialorder %v2504, %v2504
        %vm2521 = vcmp.ne.f32.partialorder %v2505, %v2505
        %v2522 = vsel %vm2506, 0.0, %v2490
        %v2523 = vsel %vm2507, 0.0, %v2491
        %v2524 = vsel %vm2508, 0.0, %v2492
        %v2525 = vsel %vm2509, 0.0, %v2493
        %v2526 = vsel %vm2510, 0.0, %v2494
        %v2527 = vsel %vm2511, 0.0, %v2495
        %v2528 = vsel %vm2512, 0.0, %v2496
        %v2529 = vsel %vm2513, 0.0, %v2497
        %v2530 = vsel %vm2514, 0.0, %v2498
        %v2531 = vsel %vm2515, 0.0, %v2499
        %v2532 = vsel %vm2516, 0.0, %v2500
        %v2533 = vsel %vm2517, 0.0, %v2501
        %v2534 = vsel %vm2518, 0.0, %v2502
        %v2535 = vsel %vm2519, 0.0, %v2503
        %v2536 = vsel %vm2520, 0.0, %v2504
        %v2537 = vsel %vm2521, 0.0, %v2505
        %2554 = vrot.lane.b32.xlu0 %v983, 64
        %v2555 = vpop.permute.xlu0 %2554
        %2556 = vrot.lane.b32.xlu0 %v988, 64
        %v2557 = vpop.permute.xlu0 %2556
        %2558 = vrot.lane.b32.xlu0 %v993, 64
        %v2559 = vpop.permute.xlu0 %2558
        %2560 = vrot.lane.b32.xlu0 %v998, 64
        %v2561 = vpop.permute.xlu0 %2560
        %2562 = vrot.lane.b32.xlu0 %v1003, 64
        %v2563 = vpop.permute.xlu0 %2562
        %2564 = vrot.lane.b32.xlu0 %v1008, 64
        %v2565 = vpop.permute.xlu0 %2564
        %2566 = vrot.lane.b32.xlu0 %v1013, 64
        %v2567 = vpop.permute.xlu0 %2566
        %2568 = vrot.lane.b32.xlu0 %v1018, 64
        %v2569 = vpop.permute.xlu0 %2568
        %2570 = vrot.lane.b32.xlu0 %v1023, 64
        %v2571 = vpop.permute.xlu0 %2570
        %2572 = vrot.lane.b32.xlu0 %v1028, 64
        %v2573 = vpop.permute.xlu0 %2572
        %2574 = vrot.lane.b32.xlu0 %v1033, 64
        %v2575 = vpop.permute.xlu0 %2574
        %2576 = vrot.lane.b32.xlu0 %v1038, 64
        %v2577 = vpop.permute.xlu0 %2576
        %2578 = vrot.lane.b32.xlu0 %v1043, 64
        %v2579 = vpop.permute.xlu0 %2578
        %2580 = vrot.lane.b32.xlu0 %v1048, 64
        %v2581 = vpop.permute.xlu0 %2580
        %2582 = vrot.lane.b32.xlu0 %v1053, 64
        %v2583 = vpop.permute.xlu0 %2582
        %2584 = vrot.lane.b32.xlu0 %v1058, 64
        %v2585 = vpop.permute.xlu0 %2584
        %2618 = vrot.lane.b32.xlu0 %v1139, 80
        %v2619 = vpop.permute.xlu0 %2618
        %2620 = vrot.lane.b32.xlu0 %v1144, 80
        %v2621 = vpop.permute.xlu0 %2620
        %2622 = vrot.lane.b32.xlu0 %v1149, 80
        %v2623 = vpop.permute.xlu0 %2622
        %2624 = vrot.lane.b32.xlu0 %v1154, 80
        %v2625 = vpop.permute.xlu0 %2624
        %2626 = vrot.lane.b32.xlu0 %v1159, 80
        %v2627 = vpop.permute.xlu0 %2626
        %2628 = vrot.lane.b32.xlu0 %v1164, 80
        %v2629 = vpop.permute.xlu0 %2628
        %2630 = vrot.lane.b32.xlu0 %v1169, 80
        %v2631 = vpop.permute.xlu0 %2630
        %2632 = vrot.lane.b32.xlu0 %v1174, 80
        %v2633 = vpop.permute.xlu0 %2632
        %2634 = vrot.lane.b32.xlu0 %v1179, 80
        %v2635 = vpop.permute.xlu0 %2634
        %2636 = vrot.lane.b32.xlu0 %v1184, 80
        %v2637 = vpop.permute.xlu0 %2636
        %2638 = vrot.lane.b32.xlu0 %v1189, 80
        %v2639 = vpop.permute.xlu0 %2638
        %2640 = vrot.lane.b32.xlu0 %v1194, 80
        %v2641 = vpop.permute.xlu0 %2640
        %2642 = vrot.lane.b32.xlu0 %v1199, 80
        %v2643 = vpop.permute.xlu0 %2642
        %2644 = vrot.lane.b32.xlu0 %v1204, 80
        %v2645 = vpop.permute.xlu0 %2644
        %2646 = vrot.lane.b32.xlu0 %v1209, 80
        %v2647 = vpop.permute.xlu0 %2646
        %2648 = vrot.lane.b32.xlu0 %v1214, 80
        %v2649 = vpop.permute.xlu0 %2648
        %2666 = vrot.lane.b32.xlu0 %v1281, 96
        %v2667 = vpop.permute.xlu0 %2666
        %2668 = vrot.lane.b32.xlu0 %v1282, 96
        %v2669 = vpop.permute.xlu0 %2668
        %2670 = vrot.lane.b32.xlu0 %v1283, 96
        %v2671 = vpop.permute.xlu0 %2670
        %2672 = vrot.lane.b32.xlu0 %v1284, 96
        %v2673 = vpop.permute.xlu0 %2672
        %2674 = vrot.lane.b32.xlu0 %v1285, 96
        %v2675 = vpop.permute.xlu0 %2674
        %2676 = vrot.lane.b32.xlu0 %v1286, 96
        %v2677 = vpop.permute.xlu0 %2676
        %2678 = vrot.lane.b32.xlu0 %v1287, 96
        %v2679 = vpop.permute.xlu0 %2678
        %2680 = vrot.lane.b32.xlu0 %v1288, 96
        %v2681 = vpop.permute.xlu0 %2680
        %2682 = vrot.lane.b32.xlu0 %v1289, 96
        %v2683 = vpop.permute.xlu0 %2682
        %2684 = vrot.lane.b32.xlu0 %v1290, 96
        %v2685 = vpop.permute.xlu0 %2684
        %2686 = vrot.lane.b32.xlu0 %v1291, 96
        %v2687 = vpop.permute.xlu0 %2686
        %2688 = vrot.lane.b32.xlu0 %v1292, 96
        %v2689 = vpop.permute.xlu0 %2688
        %2690 = vrot.lane.b32.xlu0 %v1293, 96
        %v2691 = vpop.permute.xlu0 %2690
        %2692 = vrot.lane.b32.xlu0 %v1294, 96
        %v2693 = vpop.permute.xlu0 %2692
        %2694 = vrot.lane.b32.xlu0 %v1295, 96
        %v2695 = vpop.permute.xlu0 %2694
        %2696 = vrot.lane.b32.xlu0 %v1296, 96
        %v2697 = vpop.permute.xlu0 %2696
        %2730 = vrot.lane.b32.xlu0 %v2522, 112
        %v2731 = vpop.permute.xlu0 %2730
        %2732 = vrot.lane.b32.xlu0 %v2523, 112
        %v2733 = vpop.permute.xlu0 %2732
        %2734 = vrot.lane.b32.xlu0 %v2524, 112
        %v2735 = vpop.permute.xlu0 %2734
        %2736 = vrot.lane.b32.xlu0 %v2525, 112
        %v2737 = vpop.permute.xlu0 %2736
        %2738 = vrot.lane.b32.xlu0 %v2526, 112
        %v2739 = vpop.permute.xlu0 %2738
        %2740 = vrot.lane.b32.xlu0 %v2527, 112
        %v2741 = vpop.permute.xlu0 %2740
        %2742 = vrot.lane.b32.xlu0 %v2528, 112
        %v2743 = vpop.permute.xlu0 %2742
        %2744 = vrot.lane.b32.xlu0 %v2529, 112
        %v2745 = vpop.permute.xlu0 %2744
        %2746 = vrot.lane.b32.xlu0 %v2530, 112
        %v2747 = vpop.permute.xlu0 %2746
        %2748 = vrot.lane.b32.xlu0 %v2531, 112
        %v2749 = vpop.permute.xlu0 %2748
        %2750 = vrot.lane.b32.xlu0 %v2532, 112
        %v2751 = vpop.permute.xlu0 %2750
        %2752 = vrot.lane.b32.xlu0 %v2533, 112
        %v2753 = vpop.permute.xlu0 %2752
        %2754 = vrot.lane.b32.xlu0 %v2534, 112
        %v2755 = vpop.permute.xlu0 %2754
        %2756 = vrot.lane.b32.xlu0 %v2535, 112
        %v2757 = vpop.permute.xlu0 %2756
        %2758 = vrot.lane.b32.xlu0 %v2536, 112
        %v2759 = vpop.permute.xlu0 %2758
        %2760 = vrot.lane.b32.xlu0 %v2537, 112
        %v2761 = vpop.permute.xlu0 %2760
        %v2778 = vsel %vm646, %v1720, %v2555
        %v2779 = vsel %vm646, %v1721, %v2557
        %v2780 = vsel %vm646, %v1722, %v2559
        %v2781 = vsel %vm646, %v1723, %v2561
        %v2782 = vsel %vm646, %v1724, %v2563
        %v2783 = vsel %vm646, %v1725, %v2565
        %v2784 = vsel %vm646, %v1726, %v2567
        %v2785 = vsel %vm646, %v1727, %v2569
        %v2786 = vsel %vm646, %v1728, %v2571
        %v2787 = vsel %vm646, %v1729, %v2573
        %v2788 = vsel %vm646, %v1730, %v2575
        %v2789 = vsel %vm646, %v1731, %v2577
        %v2790 = vsel %vm646, %v1732, %v2579
        %v2791 = vsel %vm646, %v1733, %v2581
        %v2792 = vsel %vm646, %v1734, %v2583
        %v2793 = vsel %vm646, %v1735, %v2585
        %vm2794 = vcmask 654336
        %v2795 = vsel %vm2794, %v2778, %v2619
        %v2796 = vsel %vm2794, %v2779, %v2621
        %v2797 = vsel %vm2794, %v2780, %v2623
        %v2798 = vsel %vm2794, %v2781, %v2625
        %v2799 = vsel %vm2794, %v2782, %v2627
        %v2800 = vsel %vm2794, %v2783, %v2629
        %v2801 = vsel %vm2794, %v2784, %v2631
        %v2802 = vsel %vm2794, %v2785, %v2633
        %v2803 = vsel %vm2794, %v2786, %v2635
        %v2804 = vsel %vm2794, %v2787, %v2637
        %v2805 = vsel %vm2794, %v2788, %v2639
        %v2806 = vsel %vm2794, %v2789, %v2641
        %v2807 = vsel %vm2794, %v2790, %v2643
        %v2808 = vsel %vm2794, %v2791, %v2645
        %v2809 = vsel %vm2794, %v2792, %v2647
        %v2810 = vsel %vm2794, %v2793, %v2649
        %vm2811 = vcmask 785408
        %v2812 = vsel %vm2811, %v2795, %v2667
        %v2813 = vsel %vm2811, %v2796, %v2669
        %v2814 = vsel %vm2811, %v2797, %v2671
        %v2815 = vsel %vm2811, %v2798, %v2673
        %v2816 = vsel %vm2811, %v2799, %v2675
        %v2817 = vsel %vm2811, %v2800, %v2677
        %v2818 = vsel %vm2811, %v2801, %v2679
        %v2819 = vsel %vm2811, %v2802, %v2681
        %v2820 = vsel %vm2811, %v2803, %v2683
        %v2821 = vsel %vm2811, %v2804, %v2685
        %v2822 = vsel %vm2811, %v2805, %v2687
        %v2823 = vsel %vm2811, %v2806, %v2689
        %v2824 = vsel %vm2811, %v2807, %v2691
        %v2825 = vsel %vm2811, %v2808, %v2693
        %v2826 = vsel %vm2811, %v2809, %v2695
        %v2827 = vsel %vm2811, %v2810, %v2697
        %vm2828 = vcmask 916480
        %v2829 = vsel %vm2828, %v2812, %v2731
        %v2830 = vsel %vm2828, %v2813, %v2733
        %v2831 = vsel %vm2828, %v2814, %v2735
        %v2832 = vsel %vm2828, %v2815, %v2737
        %v2833 = vsel %vm2828, %v2816, %v2739
        %v2834 = vsel %vm2828, %v2817, %v2741
        %v2835 = vsel %vm2828, %v2818, %v2743
        %v2836 = vsel %vm2828, %v2819, %v2745
        %v2837 = vsel %vm2828, %v2820, %v2747
        %v2838 = vsel %vm2828, %v2821, %v2749
        %v2839 = vsel %vm2828, %v2822, %v2751
        %v2840 = vsel %vm2828, %v2823, %v2753
        %v2841 = vsel %vm2828, %v2824, %v2755
        %v2842 = vsel %vm2828, %v2825, %v2757
        %v2843 = vsel %vm2828, %v2826, %v2759
        %v2844 = vsel %vm2828, %v2827, %v2761
        %vm2845 = vcmask 949248
        %v2846 = vsel %vm2845, %v2829, 0.0
        %v2847 = vsel %vm2845, %v2830, 0.0
        %v2848 = vsel %vm2845, %v2831, 0.0
        %v2849 = vsel %vm2845, %v2832, 0.0
        %v2850 = vsel %vm2845, %v2833, 0.0
        %v2851 = vsel %vm2845, %v2834, 0.0
        %v2852 = vsel %vm2845, %v2835, 0.0
        %v2853 = vsel %vm2845, %v2836, 0.0
        %v2854 = vsel %vm2845, %v2837, 0.0
        %v2855 = vsel %vm2845, %v2838, 0.0
        %v2856 = vsel %vm2845, %v2839, 0.0
        %v2857 = vsel %vm2845, %v2840, 0.0
        %v2858 = vsel %vm2845, %v2841, 0.0
        %v2859 = vsel %vm2845, %v2842, 0.0
        %v2860 = vsel %vm2845, %v2843, 0.0
        %v2861 = vsel %vm2845, %v2844, 0.0
        %2862 = vst [vmem:[%s585] sm:$0xff] %v2846
        %2863 = vst [vmem:[%s585 + $0x8] sm:$0xff] %v2847
        %2864 = vst [vmem:[%s585 + $0x10] sm:$0xff] %v2848
        %2865 = vst [vmem:[%s585 + $0x18] sm:$0xff] %v2849
        %2866 = vst [vmem:[%s585 + $0x20] sm:$0xff] %v2850
        %2867 = vst [vmem:[%s585 + $0x28] sm:$0xff] %v2851
        %2868 = vst [vmem:[%s585 + $0x30] sm:$0xff] %v2852
        %2869 = vst [vmem:[%s585 + $0x38] sm:$0xff] %v2853
        %2870 = vst [vmem:[%s585 + $0x40] sm:$0xff] %v2854
        %2871 = vst [vmem:[%s585 + $0x48] sm:$0xff] %v2855
        %2872 = vst [vmem:[%s585 + $0x50] sm:$0xff] %v2856
        %2873 = vst [vmem:[%s585 + $0x58] sm:$0xff] %v2857
        %2874 = vst [vmem:[%s585 + $0x60] sm:$0xff] %v2858
        %2875 = vst [vmem:[%s585 + $0x68] sm:$0xff] %v2859
        %2876 = vst [vmem:[%s585 + $0x70] sm:$0xff] %v2860
        %2877 = vst [vmem:[%s585 + $0x78] sm:$0xff] %v2861
        %s2878 = sand.u32 %s428, 1
        %s2879 = scalar_lea.sflag [#allocation3], %s2878
        %s2880 = sand.u32 %s428, 1
        %s2881 = smul.addr %s2880, 128
        %s2882 = scalar_lea.vmem [#allocation2], %s2881
        // Predicated region
        $region93: #{tpu_custom_call.1} parent=91 // pred_check
          %p2883 = pneg %p438
        $region94: #{tpu_custom_call.1} parent=91 // pred_check_branch
          %2885 = sbr.rel (%p2883) target = $region96
        $region95: #{tpu_custom_call.1} parent=91 // pred_region
          %s2886 = smul.u32 16, %s32
          %s2888 = ssub.s32 2048, 2048
          %2889 = vsyncadd %s2879, %s2888
          %s2890 = smul.addr %s2886, 128
          %s2891 = scalar_lea.hbm %s18, %s2890
          %s2892 = sshll.u32 %s2882, 4
          %s2893 = int_to_ptr.vmem [resolvable:$true] %s2892
          %2898 = dma.vmem_to_hbm [thread:$0]  %s2893, 2048, %s2891, %s2879, 128, 128, 8
        $region96: #{tpu_custom_call.1} parent=91 // pred_fallthru
          _
      $region92: #{tpu_custom_call.1} parent=5 // pred_fallthru
        _
      %p2899 = scmp.le.s32.totalorder 2, %s27
      // Predicated region
      $region97: #{tpu_custom_call.1} parent=5 // pred_check
        %p2900 = pneg %p2899
      $region98: #{tpu_custom_call.1} parent=5 // pred_check_branch
        %2902 = sbr.rel (%p2900) target = $region100
      $region99: #{tpu_custom_call.1} parent=5 // pred_region
        %s2903 = ssub.s32 %s27, 2
        // Predicated region
        $region101: #{tpu_custom_call.1} parent=99 // pred_check
          %p2904 = pneg %p444
        $region102: #{tpu_custom_call.1} parent=99 // pred_check_branch
          %2906 = sbr.rel (%p2904) target = $region104
        $region103: #{tpu_custom_call.1} parent=99 // pred_region
          %s2907 = sand.u32 %s429, 1
          %s2908 = scalar_lea.sflag [#allocation3], %s2907
          %s2909 = sand.u32 %s429, 1
          %s2910 = smul.addr %s2909, 128
          %s2911 = scalar_lea.vmem [#allocation2], %s2910
          %2912 = dma.done %s2908, 2048
        $region104: #{tpu_custom_call.1} parent=99 // pred_fallthru
          _
      $region100: #{tpu_custom_call.1} parent=5 // pred_fallthru
        _
    $region6: #{tpu_custom_call.1} parent=1 // loop_footer
      %s31 = sadd.s32 1, %s27
    $region7: #{tpu_custom_call.1} parent=1 // loop_footer_branch
      %26 = sbr.rel target = $region3
    $region8: #{tpu_custom_call.1} parent=1 // loop_exit
      _
    %2913 = vsyncpa [#allocation3], 1
    %s2914 = scalar_lea.sflag [#allocation3], 1
    %2915 = vsyncpa %s2914, 1

</llo_original>
